<compile_context>
chip_gen: v7x
topology: tpu7x:2x2x1
jax: 0.10.0
libtpu: 0.0.40
codegen_flags: <defaults>
</compile_context>

<pallas_src>
import jax
import jax.numpy as jnp
from jax.experimental import pallas as pl
from jax.experimental.pallas import tpu as pltpu

B = 8          # batch size (multiple of 8 -> full sublane tiles)
CIN = 4096     # input channels (fixed by the module)
CH = 100       # hidden channels (logical)
CHP = 128      # hidden channels padded to a full lane tile
EPS = 1e-5     # nn.BatchNorm2d default eps


def classifier_kernel(x_ref, w1_ref, gamma_ref, beta_ref, w2_ref, o_ref):
    # x_ref:     (B, CIN)   f32   (cast to bf16 in-kernel)
    # w1_ref:    (CIN, CHP) bf16  (zero-padded cols CH..CHP)
    # gamma_ref: (1, CHP)   f32   (padded with 1.0)
    # beta_ref:  (1, CHP)   f32   (padded with 0.0)
    # w2_ref:    (1, CHP)   f32   (padded with 0.0)
    # o_ref:     (B, 1)     f32
    nb = x_ref.shape[0]

    # Cast x on the VPU inside the kernel (removes a per-call wrapper op).
    x_bf16 = x_ref[...].astype(jnp.bfloat16)

    # Conv2d(4096, 100, k=1, bias=False)  ==  x @ W1  (bf16 MXU, f32 accum)
    h = jnp.dot(x_bf16, w1_ref[...],
                preferred_element_type=jnp.float32)            # (B, CHP) f32

    # BatchNorm2d in training mode: per-channel batch stats (H=W=1 so the
    # reduction is over batch), biased variance.  One pass: s1, s2.
    s1 = jnp.sum(h, axis=0, keepdims=True)                      # (1, CHP)
    s2 = jnp.sum(h * h, axis=0, keepdims=True)                  # (1, CHP)
    inv_n = 1.0 / nb
    mean = s1 * inv_n
    var = jnp.maximum(s2 * inv_n - mean * mean, 0.0)            # clamp f32 cancellation
    h = (h - mean) * jax.lax.rsqrt(var + EPS)
    h = h * gamma_ref[...] + beta_ref[...]

    # ReLU
    h = jnp.maximum(h, 0.0)

    # Conv2d(100, 1, k=1, bias=False): N=1 matmul done as lane-wise mul +
    # cross-lane reduce (padded lanes contribute 0), then ReLU.
    out = jnp.sum(h * w2_ref[...], axis=-1, keepdims=True)      # (B, 1)
    o_ref[...] = jnp.maximum(out, 0.0)


def prepare_classifier_params(w1, gamma, beta, w2):
    """One-time parameter prep (pad 100->128, cast W1 to bf16).

    Hoisted out of the per-call path: call once at init, reuse the returned
    arrays for every forward call."""
    w1p = jnp.zeros((CIN, CHP), jnp.bfloat16).at[:, :CH].set(
        w1.astype(jnp.bfloat16))
    gammap = jnp.ones((1, CHP), jnp.float32).at[0, :CH].set(
        gamma.astype(jnp.float32))
    betap = jnp.zeros((1, CHP), jnp.float32).at[0, :CH].set(
        beta.astype(jnp.float32))
    w2p = jnp.zeros((1, CHP), jnp.float32).at[0, :CH].set(
        w2.reshape(CH).astype(jnp.float32))
    return jax.device_put((w1p, gammap, betap, w2p))


@jax.jit
def classifier_forward(x_nchw, w1p, gammap, betap, w2p):
    """x_nchw: [B, 4096, 1, 1] f32; w1p/gammap/betap/w2p from
    prepare_classifier_params.  Returns [B, 1] f32 (== out.view(B, 1))."""
    b = x_nchw.shape[0]
    x2d = x_nchw.reshape(b, CIN)   # [B,4096,1,1] -> [B,4096]; no data movement

    grid_spec = pl.GridSpec(
        grid=(1,),
        in_specs=[
            pl.BlockSpec((b, CIN), lambda i: (0, 0)),
            pl.BlockSpec((CIN, CHP), lambda i: (0, 0)),
            pl.BlockSpec((1, CHP), lambda i: (0, 0)),
            pl.BlockSpec((1, CHP), lambda i: (0, 0)),
            pl.BlockSpec((1, CHP), lambda i: (0, 0)),
        ],
        out_specs=pl.BlockSpec((b, 1), lambda i: (0, 0)),
    )

    return pl.pallas_call(
        classifier_kernel,
        out_shape=jax.ShapeDtypeStruct((b, 1), jnp.float32),
        grid_spec=grid_spec,
        compiler_params=pltpu.CompilerParams(
            dimension_semantics=("arbitrary",)),
    )(x2d, w1p, gammap, betap, w2p)


if __name__ == "__main__":
    key = jax.random.PRNGKey(0)
    k_x, k_w1, k_w2, k_g, k_b = jax.random.split(key, 5)

    # Deterministic synthetic parameters (shapes from the module __init__).
    x = jax.random.normal(k_x, (B, CIN, 1, 1), dtype=jnp.float32)
    w1 = jax.random.normal(k_w1, (CIN, CH), dtype=jnp.float32) * 0.02    # conv1 weight
    w2 = jax.random.normal(k_w2, (CH, 1), dtype=jnp.float32) * 0.1       # conv2 weight
    gamma = 1.0 + 0.1 * jax.random.normal(k_g, (CH,), dtype=jnp.float32)  # BN weight
    beta = 0.1 * jax.random.normal(k_b, (CH,), dtype=jnp.float32)         # BN bias

    # One-time weight prep (hoisted out of the hot path).
    w1p, gammap, betap, w2p = prepare_classifier_params(w1, gamma, beta, w2)

    out = classifier_forward(x, w1p, gammap, betap, w2p)
    out = jax.block_until_ready(out)
    assert out.shape == (B, 1)

    # Pure-JAX f32 reference (same math); looser tolerance because the kernel
    # runs the first matmul in bf16 (f32 accumulation) -- intentional
    # approximation for this classifier head.
    x2d = x.reshape(B, CIN)
    h = x2d @ w1
    m = h.mean(axis=0, keepdims=True)
    v = ((h - m) ** 2).mean(axis=0, keepdims=True)
    h = (h - m) / jnp.sqrt(v + EPS) * gamma.reshape(1, CH) + beta.reshape(1, CH)
    h = jnp.maximum(h, 0.0)
    ref = jnp.maximum(h @ w2, 0.0)
    assert jnp.allclose(out, ref, atol=5e-2, rtol=5e-2), (out, ref)

    print("KERNEL_OK")
</pallas_src>

<mosaic_0001>
module attributes {stable_mosaic.version = 11 : i64} {
  func.func @classifier_kernel(%arg0: i32, %arg1: memref<8x4096xf32, #tpu.memory_space<vmem>>, %arg2: memref<4096x128xbf16, #tpu.memory_space<vmem>>, %arg3: memref<1x128xf32, #tpu.memory_space<vmem>>, %arg4: memref<1x128xf32, #tpu.memory_space<vmem>>, %arg5: memref<1x128xf32, #tpu.memory_space<vmem>>, %arg6: memref<8x1xf32, #tpu.memory_space<vmem>>) attributes {dimension_semantics = [#tpu.dimension_semantics<arbitrary>], iteration_bounds = array<i64: 1>, scalar_prefetch = 0 : i64, scratch_operands = 0 : i64, tpu.core_type = #tpu.core_type<tc>, window_params = [{pipeline_mode = #tpu.pipeline_mode<synchronous>, transform_indices = @transform_0, window_bounds = array<i64: 8, 4096>}, {pipeline_mode = #tpu.pipeline_mode<synchronous>, transform_indices = @transform_1, window_bounds = array<i64: 4096, 128>}, {pipeline_mode = #tpu.pipeline_mode<synchronous>, transform_indices = @transform_2, window_bounds = array<i64: 1, 128>}, {pipeline_mode = #tpu.pipeline_mode<synchronous>, transform_indices = @transform_3, window_bounds = array<i64: 1, 128>}, {pipeline_mode = #tpu.pipeline_mode<synchronous>, transform_indices = @transform_4, window_bounds = array<i64: 1, 128>}, {pipeline_mode = #tpu.pipeline_mode<synchronous>, transform_indices = @transform_5, window_bounds = array<i64: 8, 1>}]} {
    %c0 = arith.constant 0 : index
    %c0_0 = arith.constant 0 : index
    %0 = vector.load %arg1[%c0, %c0_0] : memref<8x4096xf32, #tpu.memory_space<vmem>>, vector<8x4096xf32>
    %1 = arith.truncf %0 : vector<8x4096xf32> to vector<8x4096xbf16>
    %c0_1 = arith.constant 0 : index
    %c0_2 = arith.constant 0 : index
    %2 = vector.load %arg2[%c0_1, %c0_2] : memref<4096x128xbf16, #tpu.memory_space<vmem>>, vector<4096x128xbf16>
    %cst = arith.constant dense<0.000000e+00> : vector<8x128xf32>
    %3 = tpu.matmul %1, %2, %cst {dimension_numbers = #tpu.dot_dimension_numbers<[1], [0], [0], [1], [0, 0, 1, 1], [], []>} : vector<8x4096xbf16>, vector<4096x128xbf16>, vector<8x128xf32> -> vector<8x128xf32>
    %cst_3 = arith.constant dense<0.000000e+00> : vector<128xf32>
    %4 = vector.multi_reduction <add>, %3, %cst_3 [0] : vector<8x128xf32> to vector<128xf32>
    %5 = vector.shape_cast %4 : vector<128xf32> to vector<1x128xf32>
    %6 = arith.mulf %3, %3 : vector<8x128xf32>
    %cst_4 = arith.constant dense<0.000000e+00> : vector<128xf32>
    %7 = vector.multi_reduction <add>, %6, %cst_4 [0] : vector<8x128xf32> to vector<128xf32>
    %8 = vector.shape_cast %7 : vector<128xf32> to vector<1x128xf32>
    %cst_5 = arith.constant 1.250000e-01 : f32
    %9 = vector.broadcast %cst_5 : f32 to vector<1x128xf32>
    %10 = arith.mulf %5, %9 : vector<1x128xf32>
    %cst_6 = arith.constant 1.250000e-01 : f32
    %11 = vector.broadcast %cst_6 : f32 to vector<1x128xf32>
    %12 = arith.mulf %8, %11 : vector<1x128xf32>
    %13 = arith.mulf %10, %10 : vector<1x128xf32>
    %14 = arith.subf %12, %13 : vector<1x128xf32>
    %cst_7 = arith.constant 0.000000e+00 : f32
    %15 = vector.broadcast %cst_7 : f32 to vector<1x128xf32>
    %16 = arith.maximumf %14, %15 : vector<1x128xf32>
    %17 = vector.broadcast %10 : vector<1x128xf32> to vector<8x128xf32>
    %18 = arith.subf %3, %17 : vector<8x128xf32>
    %cst_8 = arith.constant 9.99999974E-6 : f32
    %19 = vector.broadcast %cst_8 : f32 to vector<1x128xf32>
    %20 = arith.addf %16, %19 : vector<1x128xf32>
    %21 = math.rsqrt %20 : vector<1x128xf32>
    %22 = vector.broadcast %21 : vector<1x128xf32> to vector<8x128xf32>
    %23 = arith.mulf %18, %22 : vector<8x128xf32>
    %c0_9 = arith.constant 0 : index
    %c0_10 = arith.constant 0 : index
    %24 = vector.load %arg3[%c0_9, %c0_10] : memref<1x128xf32, #tpu.memory_space<vmem>>, vector<1x128xf32>
    %25 = vector.broadcast %24 : vector<1x128xf32> to vector<8x128xf32>
    %26 = arith.mulf %23, %25 : vector<8x128xf32>
    %c0_11 = arith.constant 0 : index
    %c0_12 = arith.constant 0 : index
    %27 = vector.load %arg4[%c0_11, %c0_12] : memref<1x128xf32, #tpu.memory_space<vmem>>, vector<1x128xf32>
    %28 = vector.broadcast %27 : vector<1x128xf32> to vector<8x128xf32>
    %29 = arith.addf %26, %28 : vector<8x128xf32>
    %cst_13 = arith.constant 0.000000e+00 : f32
    %30 = vector.broadcast %cst_13 : f32 to vector<8x128xf32>
    %31 = arith.maximumf %29, %30 : vector<8x128xf32>
    %c0_14 = arith.constant 0 : index
    %c0_15 = arith.constant 0 : index
    %32 = vector.load %arg5[%c0_14, %c0_15] : memref<1x128xf32, #tpu.memory_space<vmem>>, vector<1x128xf32>
    %33 = vector.broadcast %32 : vector<1x128xf32> to vector<8x128xf32>
    %34 = arith.mulf %31, %33 : vector<8x128xf32>
    %cst_16 = arith.constant dense<0.000000e+00> : vector<8xf32>
    %35 = vector.multi_reduction <add>, %34, %cst_16 [1] : vector<8x128xf32> to vector<8xf32>
    %36 = vector.shape_cast %35 : vector<8xf32> to vector<8x1xf32>
    %cst_17 = arith.constant 0.000000e+00 : f32
    %37 = vector.broadcast %cst_17 : f32 to vector<8x1xf32>
    %38 = arith.maximumf %36, %37 : vector<8x1xf32>
    %c0_18 = arith.constant 0 : index
    %c0_19 = arith.constant 0 : index
    %39 = vector.load %arg6[%c0_18, %c0_19] : memref<8x1xf32, #tpu.memory_space<vmem>>, vector<8x1xf32>
    tpu.vector_store %arg6[%c0_18, %c0_19], %38 {strides = array<i32>} : memref<8x1xf32, #tpu.memory_space<vmem>>, vector<8x1xf32>,
    return
  }
  func.func @transform_0(%arg0: i32) -> (i32, i32) {
    %c0_i32 = arith.constant 0 : i32
    %c0_i32_0 = arith.constant 0 : i32
    %c0_i32_1 = arith.constant 0 : i32
    return %c0_i32, %c0_i32_0 : i32, i32
  }
  func.func @transform_1(%arg0: i32) -> (i32, i32) {
    %c0_i32 = arith.constant 0 : i32
    %c0_i32_0 = arith.constant 0 : i32
    %c0_i32_1 = arith.constant 0 : i32
    return %c0_i32, %c0_i32_0 : i32, i32
  }
  func.func @transform_2(%arg0: i32) -> (i32, i32) {
    %c0_i32 = arith.constant 0 : i32
    %c0_i32_0 = arith.constant 0 : i32
    %c0_i32_1 = arith.constant 0 : i32
    return %c0_i32, %c0_i32_0 : i32, i32
  }
  func.func @transform_3(%arg0: i32) -> (i32, i32) {
    %c0_i32 = arith.constant 0 : i32
    %c0_i32_0 = arith.constant 0 : i32
    %c0_i32_1 = arith.constant 0 : i32
    return %c0_i32, %c0_i32_0 : i32, i32
  }
  func.func @transform_4(%arg0: i32) -> (i32, i32) {
    %c0_i32 = arith.constant 0 : i32
    %c0_i32_0 = arith.constant 0 : i32
    %c0_i32_1 = arith.constant 0 : i32
    return %c0_i32, %c0_i32_0 : i32, i32
  }
  func.func @transform_5(%arg0: i32) -> (i32, i32) {
    %c0_i32 = arith.constant 0 : i32
    %c0_i32_0 = arith.constant 0 : i32
    %c0_i32_1 = arith.constant 0 : i32
    return %c0_i32, %c0_i32_0 : i32, i32
  }
}

</mosaic_0001>

<llo_original>
// kernel: classifier_forward.1
$region0: #{classifier_forward.1}
  #allocation0 [shape = 'u32[]', space=smem, size = 0x4, offset = 0x4, fixed_abs, tag = 'smem constant byte address 0x4 - core index']
  #allocation1 [shape = 'u32[144,128]{1,0:T(1,128)}', space=vmem, size = 0x12000, scoped, tag = 'internal scratch']
  %s0 = inlined_call_operand.vmem [shape: f32[8,4096], index: 0, kind: input, shape index: {}]
  %s1 = inlined_call_operand.hbm [shape: bf16[4096,128], index: 1, kind: input, shape index: {}]
  %s2 = inlined_call_operand.vmem [shape: f32[1,128], index: 2, kind: input, shape index: {}]
  %s3 = inlined_call_operand.vmem [shape: f32[1,128], index: 3, kind: input, shape index: {}]
  %s4 = inlined_call_operand.vmem [shape: f32[1,128], index: 4, kind: input, shape index: {}]
  %s5 = inlined_call_operand.vmem [shape: f32[8,1], index: 5, kind: output, shape index: {}]
  %s6 = sld [smem:[#allocation0]]
  $region34: #{classifier_forward.1} parent=0
    _
  %s8 = ssub.s32 1, %s6
  %s9 = scalar_select 0, %s8, %s6
  $region1: #{classifier_forward.1} parent=0
    #allocation2 [shape = 'u8[1048576]{0}', space=vmem, size = 0x100000, scoped, tag = 'input window, operand 1, single buffered']
    #allocation3 [shape = 's32[1]{0}', space=sflag, size = 0x4, scoped, tag = 'scoped memory for classifier_forward.1']
    %10 = vsyncpa [#allocation3], 0
    // Predicated region
    $region2: #{classifier_forward.1} parent=1 // pred_check
      _
    $region3: #{classifier_forward.1} parent=1 // pred_check_branch
      %12 = sbr.rel (0) target = $region5
    $region4: #{classifier_forward.1} parent=1 // pred_region
      _
    $region5: #{classifier_forward.1} parent=1 // pred_fallthru
      _
    // Predicated region
    $region6: #{classifier_forward.1} parent=1 // pred_check
      _
    $region7: #{classifier_forward.1} parent=1 // pred_check_branch
      %14 = sbr.rel (0) target = $region9
    $region8: #{classifier_forward.1} parent=1 // pred_region
      %s16 = ssub.s32 32768, 32768
      %17 = vsyncadd [#allocation3], %s16
      %s18 = sshll.u32 [#allocation2], 4
      %s19 = int_to_ptr.vmem [resolvable:$true] %s18
      %24 = dma.hbm_to_vmem [thread:$0]  %s1, 32768, %s19, [#allocation3], 64, 64, 4
    $region9: #{classifier_forward.1} parent=1 // pred_fallthru
      _
    // Predicated region
    $region10: #{classifier_forward.1} parent=1 // pred_check
      _
    $region11: #{classifier_forward.1} parent=1 // pred_check_branch
      %26 = sbr.rel (0) target = $region13
    $region12: #{classifier_forward.1} parent=1 // pred_region
      _
    $region13: #{classifier_forward.1} parent=1 // pred_fallthru
      _
    // Predicated region
    $region14: #{classifier_forward.1} parent=1 // pred_check
      _
    $region15: #{classifier_forward.1} parent=1 // pred_check_branch
      %28 = sbr.rel (0) target = $region17
    $region16: #{classifier_forward.1} parent=1 // pred_region
      _
    $region17: #{classifier_forward.1} parent=1 // pred_fallthru
      _
    // Predicated region
    $region18: #{classifier_forward.1} parent=1 // pred_check
      _
    $region19: #{classifier_forward.1} parent=1 // pred_check_branch
      %30 = sbr.rel (0) target = $region21
    $region20: #{classifier_forward.1} parent=1 // pred_region
      _
    $region21: #{classifier_forward.1} parent=1 // pred_fallthru
      _
    // Predicated region
    $region22: #{classifier_forward.1} parent=1 // pred_check
      _
    $region23: #{classifier_forward.1} parent=1 // pred_check_branch
      %32 = sbr.rel (0) target = $region25
    $region24: #{classifier_forward.1} parent=1 // pred_region
      %33 = dma.done [#allocation3], 32768
    $region25: #{classifier_forward.1} parent=1 // pred_fallthru
      _
    %v35 = vld [vmem:[%s0] sm:$0xff]
    %v36 = vld [vmem:[%s0 + $0x8] sm:$0xff]
    %v37 = vld [vmem:[%s0 + $0x10] sm:$0xff]
    %v38 = vld [vmem:[%s0 + $0x18] sm:$0xff]
    %v39 = vld [vmem:[%s0 + $0x20] sm:$0xff]
    %v40 = vld [vmem:[%s0 + $0x28] sm:$0xff]
    %v41 = vld [vmem:[%s0 + $0x30] sm:$0xff]
    %v42 = vld [vmem:[%s0 + $0x38] sm:$0xff]
    %v43 = vld [vmem:[%s0 + $0x40] sm:$0xff]
    %v44 = vld [vmem:[%s0 + $0x48] sm:$0xff]
    %v45 = vld [vmem:[%s0 + $0x50] sm:$0xff]
    %v46 = vld [vmem:[%s0 + $0x58] sm:$0xff]
    %v47 = vld [vmem:[%s0 + $0x60] sm:$0xff]
    %v48 = vld [vmem:[%s0 + $0x68] sm:$0xff]
    %v49 = vld [vmem:[%s0 + $0x70] sm:$0xff]
    %v50 = vld [vmem:[%s0 + $0x78] sm:$0xff]
    %v51 = vld [vmem:[%s0 + $0x80] sm:$0xff]
    %v52 = vld [vmem:[%s0 + $0x88] sm:$0xff]
    %v53 = vld [vmem:[%s0 + $0x90] sm:$0xff]
    %v54 = vld [vmem:[%s0 + $0x98] sm:$0xff]
    %v55 = vld [vmem:[%s0 + $0xa0] sm:$0xff]
    %v56 = vld [vmem:[%s0 + $0xa8] sm:$0xff]
    %v57 = vld [vmem:[%s0 + $0xb0] sm:$0xff]
    %v58 = vld [vmem:[%s0 + $0xb8] sm:$0xff]
    %v59 = vld [vmem:[%s0 + $0xc0] sm:$0xff]
    %v60 = vld [vmem:[%s0 + $0xc8] sm:$0xff]
    %v61 = vld [vmem:[%s0 + $0xd0] sm:$0xff]
    %v62 = vld [vmem:[%s0 + $0xd8] sm:$0xff]
    %v63 = vld [vmem:[%s0 + $0xe0] sm:$0xff]
    %v64 = vld [vmem:[%s0 + $0xe8] sm:$0xff]
    %v65 = vld [vmem:[%s0 + $0xf0] sm:$0xff]
    %v66 = vld [vmem:[%s0 + $0xf8] sm:$0xff]
    %v67 = vpack.c.bf16 %v35, %v35
    %v68 = vpack.c.bf16 %v36, %v36
    %v69 = vpack.c.bf16 %v37, %v37
    %v70 = vpack.c.bf16 %v38, %v38
    %v71 = vpack.c.bf16 %v39, %v39
    %v72 = vpack.c.bf16 %v40, %v40
    %v73 = vpack.c.bf16 %v41, %v41
    %v74 = vpack.c.bf16 %v42, %v42
    %v75 = vpack.c.bf16 %v43, %v43
    %v76 = vpack.c.bf16 %v44, %v44
    %v77 = vpack.c.bf16 %v45, %v45
    %v78 = vpack.c.bf16 %v46, %v46
    %v79 = vpack.c.bf16 %v47, %v47
    %v80 = vpack.c.bf16 %v48, %v48
    %v81 = vpack.c.bf16 %v49, %v49
    %v82 = vpack.c.bf16 %v50, %v50
    %v83 = vpack.c.bf16 %v51, %v51
    %v84 = vpack.c.bf16 %v52, %v52
    %v85 = vpack.c.bf16 %v53, %v53
    %v86 = vpack.c.bf16 %v54, %v54
    %v87 = vpack.c.bf16 %v55, %v55
    %v88 = vpack.c.bf16 %v56, %v56
    %v89 = vpack.c.bf16 %v57, %v57
    %v90 = vpack.c.bf16 %v58, %v58
    %v91 = vpack.c.bf16 %v59, %v59
    %v92 = vpack.c.bf16 %v60, %v60
    %v93 = vpack.c.bf16 %v61, %v61
    %v94 = vpack.c.bf16 %v62, %v62
    %v95 = vpack.c.bf16 %v63, %v63
    %v96 = vpack.c.bf16 %v64, %v64
    %v97 = vpack.c.bf16 %v65, %v65
    %v98 = vpack.c.bf16 %v66, %v66
    %v99 = vld [vmem:[#allocation2] sm:$0xf]
    %v100 = vld [vmem:[#allocation2 + $0x4] sm:$0xf]
    %v101 = vld [vmem:[#allocation2 + $0x8] sm:$0xf]
    %v102 = vld [vmem:[#allocation2 + $0xc] sm:$0xf]
    %v103 = vld [vmem:[#allocation2 + $0x10] sm:$0xf]
    %v104 = vld [vmem:[#allocation2 + $0x14] sm:$0xf]
    %v105 = vld [vmem:[#allocation2 + $0x18] sm:$0xf]
    %v106 = vld [vmem:[#allocation2 + $0x1c] sm:$0xf]
    %v107 = vld [vmem:[#allocation2 + $0x20] sm:$0xf]
    %v108 = vld [vmem:[#allocation2 + $0x24] sm:$0xf]
    %v109 = vld [vmem:[#allocation2 + $0x28] sm:$0xf]
    %v110 = vld [vmem:[#allocation2 + $0x2c] sm:$0xf]
    %v111 = vld [vmem:[#allocation2 + $0x30] sm:$0xf]
    %v112 = vld [vmem:[#allocation2 + $0x34] sm:$0xf]
    %v113 = vld [vmem:[#allocation2 + $0x38] sm:$0xf]
    %v114 = vld [vmem:[#allocation2 + $0x3c] sm:$0xf]
    %v115 = vld [vmem:[#allocation2 + $0x40] sm:$0xf]
    %v116 = vld [vmem:[#allocation2 + $0x44] sm:$0xf]
    %v117 = vld [vmem:[#allocation2 + $0x48] sm:$0xf]
    %v118 = vld [vmem:[#allocation2 + $0x4c] sm:$0xf]
    %v119 = vld [vmem:[#allocation2 + $0x50] sm:$0xf]
    %v120 = vld [vmem:[#allocation2 + $0x54] sm:$0xf]
    %v121 = vld [vmem:[#allocation2 + $0x58] sm:$0xf]
    %v122 = vld [vmem:[#allocation2 + $0x5c] sm:$0xf]
    %v123 = vld [vmem:[#allocation2 + $0x60] sm:$0xf]
    %v124 = vld [vmem:[#allocation2 + $0x64] sm:$0xf]
    %v125 = vld [vmem:[#allocation2 + $0x68] sm:$0xf]
    %v126 = vld [vmem:[#allocation2 + $0x6c] sm:$0xf]
    %v127 = vld [vmem:[#allocation2 + $0x70] sm:$0xf]
    %v128 = vld [vmem:[#allocation2 + $0x74] sm:$0xf]
    %v129 = vld [vmem:[#allocation2 + $0x78] sm:$0xf]
    %v130 = vld [vmem:[#allocation2 + $0x7c] sm:$0xf]
    %v131 = vld [vmem:[#allocation2 + $0x80] sm:$0xf]
    %v132 = vld [vmem:[#allocation2 + $0x84] sm:$0xf]
    %v133 = vld [vmem:[#allocation2 + $0x88] sm:$0xf]
    %v134 = vld [vmem:[#allocation2 + $0x8c] sm:$0xf]
    %v135 = vld [vmem:[#allocation2 + $0x90] sm:$0xf]
    %v136 = vld [vmem:[#allocation2 + $0x94] sm:$0xf]
    %v137 = vld [vmem:[#allocation2 + $0x98] sm:$0xf]
    %v138 = vld [vmem:[#allocation2 + $0x9c] sm:$0xf]
    %v139 = vld [vmem:[#allocation2 + $0xa0] sm:$0xf]
    %v140 = vld [vmem:[#allocation2 + $0xa4] sm:$0xf]
    %v141 = vld [vmem:[#allocation2 + $0xa8] sm:$0xf]
    %v142 = vld [vmem:[#allocation2 + $0xac] sm:$0xf]
    %v143 = vld [vmem:[#allocation2 + $0xb0] sm:$0xf]
    %v144 = vld [vmem:[#allocation2 + $0xb4] sm:$0xf]
    %v145 = vld [vmem:[#allocation2 + $0xb8] sm:$0xf]
    %v146 = vld [vmem:[#allocation2 + $0xbc] sm:$0xf]
    %v147 = vld [vmem:[#allocation2 + $0xc0] sm:$0xf]
    %v148 = vld [vmem:[#allocation2 + $0xc4] sm:$0xf]
    %v149 = vld [vmem:[#allocation2 + $0xc8] sm:$0xf]
    %v150 = vld [vmem:[#allocation2 + $0xcc] sm:$0xf]
    %v151 = vld [vmem:[#allocation2 + $0xd0] sm:$0xf]
    %v152 = vld [vmem:[#allocation2 + $0xd4] sm:$0xf]
    %v153 = vld [vmem:[#allocation2 + $0xd8] sm:$0xf]
    %v154 = vld [vmem:[#allocation2 + $0xdc] sm:$0xf]
    %v155 = vld [vmem:[#allocation2 + $0xe0] sm:$0xf]
    %v156 = vld [vmem:[#allocation2 + $0xe4] sm:$0xf]
    %v157 = vld [vmem:[#allocation2 + $0xe8] sm:$0xf]
    %v158 = vld [vmem:[#allocation2 + $0xec] sm:$0xf]
    %v159 = vld [vmem:[#allocation2 + $0xf0] sm:$0xf]
    %v160 = vld [vmem:[#allocation2 + $0xf4] sm:$0xf]
    %v161 = vld [vmem:[#allocation2 + $0xf8] sm:$0xf]
    %v162 = vld [vmem:[#allocation2 + $0xfc] sm:$0xf]
    %v163 = vld [vmem:[#allocation2 + $0x100] sm:$0xf]
    %v164 = vld [vmem:[#allocation2 + $0x104] sm:$0xf]
    %v165 = vld [vmem:[#allocation2 + $0x108] sm:$0xf]
    %v166 = vld [vmem:[#allocation2 + $0x10c] sm:$0xf]
    %v167 = vld [vmem:[#allocation2 + $0x110] sm:$0xf]
    %v168 = vld [vmem:[#allocation2 + $0x114] sm:$0xf]
    %v169 = vld [vmem:[#allocation2 + $0x118] sm:$0xf]
    %v170 = vld [vmem:[#allocation2 + $0x11c] sm:$0xf]
    %v171 = vld [vmem:[#allocation2 + $0x120] sm:$0xf]
    %v172 = vld [vmem:[#allocation2 + $0x124] sm:$0xf]
    %v173 = vld [vmem:[#allocation2 + $0x128] sm:$0xf]
    %v174 = vld [vmem:[#allocation2 + $0x12c] sm:$0xf]
    %v175 = vld [vmem:[#allocation2 + $0x130] sm:$0xf]
    %v176 = vld [vmem:[#allocation2 + $0x134] sm:$0xf]
    %v177 = vld [vmem:[#allocation2 + $0x138] sm:$0xf]
    %v178 = vld [vmem:[#allocation2 + $0x13c] sm:$0xf]
    %v179 = vld [vmem:[#allocation2 + $0x140] sm:$0xf]
    %v180 = vld [vmem:[#allocation2 + $0x144] sm:$0xf]
    %v181 = vld [vmem:[#allocation2 + $0x148] sm:$0xf]
    %v182 = vld [vmem:[#allocation2 + $0x14c] sm:$0xf]
    %v183 = vld [vmem:[#allocation2 + $0x150] sm:$0xf]
    %v184 = vld [vmem:[#allocation2 + $0x154] sm:$0xf]
    %v185 = vld [vmem:[#allocation2 + $0x158] sm:$0xf]
    %v186 = vld [vmem:[#allocation2 + $0x15c] sm:$0xf]
    %v187 = vld [vmem:[#allocation2 + $0x160] sm:$0xf]
    %v188 = vld [vmem:[#allocation2 + $0x164] sm:$0xf]
    %v189 = vld [vmem:[#allocation2 + $0x168] sm:$0xf]
    %v190 = vld [vmem:[#allocation2 + $0x16c] sm:$0xf]
    %v191 = vld [vmem:[#allocation2 + $0x170] sm:$0xf]
    %v192 = vld [vmem:[#allocation2 + $0x174] sm:$0xf]
    %v193 = vld [vmem:[#allocation2 + $0x178] sm:$0xf]
    %v194 = vld [vmem:[#allocation2 + $0x17c] sm:$0xf]
    %v195 = vld [vmem:[#allocation2 + $0x180] sm:$0xf]
    %v196 = vld [vmem:[#allocation2 + $0x184] sm:$0xf]
    %v197 = vld [vmem:[#allocation2 + $0x188] sm:$0xf]
    %v198 = vld [vmem:[#allocation2 + $0x18c] sm:$0xf]
    %v199 = vld [vmem:[#allocation2 + $0x190] sm:$0xf]
    %v200 = vld [vmem:[#allocation2 + $0x194] sm:$0xf]
    %v201 = vld [vmem:[#allocation2 + $0x198] sm:$0xf]
    %v202 = vld [vmem:[#allocation2 + $0x19c] sm:$0xf]
    %v203 = vld [vmem:[#allocation2 + $0x1a0] sm:$0xf]
    %v204 = vld [vmem:[#allocation2 + $0x1a4] sm:$0xf]
    %v205 = vld [vmem:[#allocation2 + $0x1a8] sm:$0xf]
    %v206 = vld [vmem:[#allocation2 + $0x1ac] sm:$0xf]
    %v207 = vld [vmem:[#allocation2 + $0x1b0] sm:$0xf]
    %v208 = vld [vmem:[#allocation2 + $0x1b4] sm:$0xf]
    %v209 = vld [vmem:[#allocation2 + $0x1b8] sm:$0xf]
    %v210 = vld [vmem:[#allocation2 + $0x1bc] sm:$0xf]
    %v211 = vld [vmem:[#allocation2 + $0x1c0] sm:$0xf]
    %v212 = vld [vmem:[#allocation2 + $0x1c4] sm:$0xf]
    %v213 = vld [vmem:[#allocation2 + $0x1c8] sm:$0xf]
    %v214 = vld [vmem:[#allocation2 + $0x1cc] sm:$0xf]
    %v215 = vld [vmem:[#allocation2 + $0x1d0] sm:$0xf]
    %v216 = vld [vmem:[#allocation2 + $0x1d4] sm:$0xf]
    %v217 = vld [vmem:[#allocation2 + $0x1d8] sm:$0xf]
    %v218 = vld [vmem:[#allocation2 + $0x1dc] sm:$0xf]
    %v219 = vld [vmem:[#allocation2 + $0x1e0] sm:$0xf]
    %v220 = vld [vmem:[#allocation2 + $0x1e4] sm:$0xf]
    %v221 = vld [vmem:[#allocation2 + $0x1e8] sm:$0xf]
    %v222 = vld [vmem:[#allocation2 + $0x1ec] sm:$0xf]
    %v223 = vld [vmem:[#allocation2 + $0x1f0] sm:$0xf]
    %v224 = vld [vmem:[#allocation2 + $0x1f4] sm:$0xf]
    %v225 = vld [vmem:[#allocation2 + $0x1f8] sm:$0xf]
    %v226 = vld [vmem:[#allocation2 + $0x1fc] sm:$0xf]
    %v227 = vld [vmem:[#allocation2 + $0x200] sm:$0xf]
    %v228 = vld [vmem:[#allocation2 + $0x204] sm:$0xf]
    %v229 = vld [vmem:[#allocation2 + $0x208] sm:$0xf]
    %v230 = vld [vmem:[#allocation2 + $0x20c] sm:$0xf]
    %v231 = vld [vmem:[#allocation2 + $0x210] sm:$0xf]
    %v232 = vld [vmem:[#allocation2 + $0x214] sm:$0xf]
    %v233 = vld [vmem:[#allocation2 + $0x218] sm:$0xf]
    %v234 = vld [vmem:[#allocation2 + $0x21c] sm:$0xf]
    %v235 = vld [vmem:[#allocation2 + $0x220] sm:$0xf]
    %v236 = vld [vmem:[#allocation2 + $0x224] sm:$0xf]
    %v237 = vld [vmem:[#allocation2 + $0x228] sm:$0xf]
    %v238 = vld [vmem:[#allocation2 + $0x22c] sm:$0xf]
    %v239 = vld [vmem:[#allocation2 + $0x230] sm:$0xf]
    %v240 = vld [vmem:[#allocation2 + $0x234] sm:$0xf]
    %v241 = vld [vmem:[#allocation2 + $0x238] sm:$0xf]
    %v242 = vld [vmem:[#allocation2 + $0x23c] sm:$0xf]
    %v243 = vld [vmem:[#allocation2 + $0x240] sm:$0xf]
    %v244 = vld [vmem:[#allocation2 + $0x244] sm:$0xf]
    %v245 = vld [vmem:[#allocation2 + $0x248] sm:$0xf]
    %v246 = vld [vmem:[#allocation2 + $0x24c] sm:$0xf]
    %v247 = vld [vmem:[#allocation2 + $0x250] sm:$0xf]
    %v248 = vld [vmem:[#allocation2 + $0x254] sm:$0xf]
    %v249 = vld [vmem:[#allocation2 + $0x258] sm:$0xf]
    %v250 = vld [vmem:[#allocation2 + $0x25c] sm:$0xf]
    %v251 = vld [vmem:[#allocation2 + $0x260] sm:$0xf]
    %v252 = vld [vmem:[#allocation2 + $0x264] sm:$0xf]
    %v253 = vld [vmem:[#allocation2 + $0x268] sm:$0xf]
    %v254 = vld [vmem:[#allocation2 + $0x26c] sm:$0xf]
    %v255 = vld [vmem:[#allocation2 + $0x270] sm:$0xf]
    %v256 = vld [vmem:[#allocation2 + $0x274] sm:$0xf]
    %v257 = vld [vmem:[#allocation2 + $0x278] sm:$0xf]
    %v258 = vld [vmem:[#allocation2 + $0x27c] sm:$0xf]
    %v259 = vld [vmem:[#allocation2 + $0x280] sm:$0xf]
    %v260 = vld [vmem:[#allocation2 + $0x284] sm:$0xf]
    %v261 = vld [vmem:[#allocation2 + $0x288] sm:$0xf]
    %v262 = vld [vmem:[#allocation2 + $0x28c] sm:$0xf]
    %v263 = vld [vmem:[#allocation2 + $0x290] sm:$0xf]
    %v264 = vld [vmem:[#allocation2 + $0x294] sm:$0xf]
    %v265 = vld [vmem:[#allocation2 + $0x298] sm:$0xf]
    %v266 = vld [vmem:[#allocation2 + $0x29c] sm:$0xf]
    %v267 = vld [vmem:[#allocation2 + $0x2a0] sm:$0xf]
    %v268 = vld [vmem:[#allocation2 + $0x2a4] sm:$0xf]
    %v269 = vld [vmem:[#allocation2 + $0x2a8] sm:$0xf]
    %v270 = vld [vmem:[#allocation2 + $0x2ac] sm:$0xf]
    %v271 = vld [vmem:[#allocation2 + $0x2b0] sm:$0xf]
    %v272 = vld [vmem:[#allocation2 + $0x2b4] sm:$0xf]
    %v273 = vld [vmem:[#allocation2 + $0x2b8] sm:$0xf]
    %v274 = vld [vmem:[#allocation2 + $0x2bc] sm:$0xf]
    %v275 = vld [vmem:[#allocation2 + $0x2c0] sm:$0xf]
    %v276 = vld [vmem:[#allocation2 + $0x2c4] sm:$0xf]
    %v277 = vld [vmem:[#allocation2 + $0x2c8] sm:$0xf]
    %v278 = vld [vmem:[#allocation2 + $0x2cc] sm:$0xf]
    %v279 = vld [vmem:[#allocation2 + $0x2d0] sm:$0xf]
    %v280 = vld [vmem:[#allocation2 + $0x2d4] sm:$0xf]
    %v281 = vld [vmem:[#allocation2 + $0x2d8] sm:$0xf]
    %v282 = vld [vmem:[#allocation2 + $0x2dc] sm:$0xf]
    %v283 = vld [vmem:[#allocation2 + $0x2e0] sm:$0xf]
    %v284 = vld [vmem:[#allocation2 + $0x2e4] sm:$0xf]
    %v285 = vld [vmem:[#allocation2 + $0x2e8] sm:$0xf]
    %v286 = vld [vmem:[#allocation2 + $0x2ec] sm:$0xf]
    %v287 = vld [vmem:[#allocation2 + $0x2f0] sm:$0xf]
    %v288 = vld [vmem:[#allocation2 + $0x2f4] sm:$0xf]
    %v289 = vld [vmem:[#allocation2 + $0x2f8] sm:$0xf]
    %v290 = vld [vmem:[#allocation2 + $0x2fc] sm:$0xf]
    %v291 = vld [vmem:[#allocation2 + $0x300] sm:$0xf]
    %v292 = vld [vmem:[#allocation2 + $0x304] sm:$0xf]
    %v293 = vld [vmem:[#allocation2 + $0x308] sm:$0xf]
    %v294 = vld [vmem:[#allocation2 + $0x30c] sm:$0xf]
    %v295 = vld [vmem:[#allocation2 + $0x310] sm:$0xf]
    %v296 = vld [vmem:[#allocation2 + $0x314] sm:$0xf]
    %v297 = vld [vmem:[#allocation2 + $0x318] sm:$0xf]
    %v298 = vld [vmem:[#allocation2 + $0x31c] sm:$0xf]
    %v299 = vld [vmem:[#allocation2 + $0x320] sm:$0xf]
    %v300 = vld [vmem:[#allocation2 + $0x324] sm:$0xf]
    %v301 = vld [vmem:[#allocation2 + $0x328] sm:$0xf]
    %v302 = vld [vmem:[#allocation2 + $0x32c] sm:$0xf]
    %v303 = vld [vmem:[#allocation2 + $0x330] sm:$0xf]
    %v304 = vld [vmem:[#allocation2 + $0x334] sm:$0xf]
    %v305 = vld [vmem:[#allocation2 + $0x338] sm:$0xf]
    %v306 = vld [vmem:[#allocation2 + $0x33c] sm:$0xf]
    %v307 = vld [vmem:[#allocation2 + $0x340] sm:$0xf]
    %v308 = vld [vmem:[#allocation2 + $0x344] sm:$0xf]
    %v309 = vld [vmem:[#allocation2 + $0x348] sm:$0xf]
    %v310 = vld [vmem:[#allocation2 + $0x34c] sm:$0xf]
    %v311 = vld [vmem:[#allocation2 + $0x350] sm:$0xf]
    %v312 = vld [vmem:[#allocation2 + $0x354] sm:$0xf]
    %v313 = vld [vmem:[#allocation2 + $0x358] sm:$0xf]
    %v314 = vld [vmem:[#allocation2 + $0x35c] sm:$0xf]
    %v315 = vld [vmem:[#allocation2 + $0x360] sm:$0xf]
    %v316 = vld [vmem:[#allocation2 + $0x364] sm:$0xf]
    %v317 = vld [vmem:[#allocation2 + $0x368] sm:$0xf]
    %v318 = vld [vmem:[#allocation2 + $0x36c] sm:$0xf]
    %v319 = vld [vmem:[#allocation2 + $0x370] sm:$0xf]
    %v320 = vld [vmem:[#allocation2 + $0x374] sm:$0xf]
    %v321 = vld [vmem:[#allocation2 + $0x378] sm:$0xf]
    %v322 = vld [vmem:[#allocation2 + $0x37c] sm:$0xf]
    %v323 = vld [vmem:[#allocation2 + $0x380] sm:$0xf]
    %v324 = vld [vmem:[#allocation2 + $0x384] sm:$0xf]
    %v325 = vld [vmem:[#allocation2 + $0x388] sm:$0xf]
    %v326 = vld [vmem:[#allocation2 + $0x38c] sm:$0xf]
    %v327 = vld [vmem:[#allocation2 + $0x390] sm:$0xf]
    %v328 = vld [vmem:[#allocation2 + $0x394] sm:$0xf]
    %v329 = vld [vmem:[#allocation2 + $0x398] sm:$0xf]
    %v330 = vld [vmem:[#allocation2 + $0x39c] sm:$0xf]
    %v331 = vld [vmem:[#allocation2 + $0x3a0] sm:$0xf]
    %v332 = vld [vmem:[#allocation2 + $0x3a4] sm:$0xf]
    %v333 = vld [vmem:[#allocation2 + $0x3a8] sm:$0xf]
    %v334 = vld [vmem:[#allocation2 + $0x3ac] sm:$0xf]
    %v335 = vld [vmem:[#allocation2 + $0x3b0] sm:$0xf]
    %v336 = vld [vmem:[#allocation2 + $0x3b4] sm:$0xf]
    %v337 = vld [vmem:[#allocation2 + $0x3b8] sm:$0xf]
    %v338 = vld [vmem:[#allocation2 + $0x3bc] sm:$0xf]
    %v339 = vld [vmem:[#allocation2 + $0x3c0] sm:$0xf]
    %v340 = vld [vmem:[#allocation2 + $0x3c4] sm:$0xf]
    %v341 = vld [vmem:[#allocation2 + $0x3c8] sm:$0xf]
    %v342 = vld [vmem:[#allocation2 + $0x3cc] sm:$0xf]
    %v343 = vld [vmem:[#allocation2 + $0x3d0] sm:$0xf]
    %v344 = vld [vmem:[#allocation2 + $0x3d4] sm:$0xf]
    %v345 = vld [vmem:[#allocation2 + $0x3d8] sm:$0xf]
    %v346 = vld [vmem:[#allocation2 + $0x3dc] sm:$0xf]
    %v347 = vld [vmem:[#allocation2 + $0x3e0] sm:$0xf]
    %v348 = vld [vmem:[#allocation2 + $0x3e4] sm:$0xf]
    %v349 = vld [vmem:[#allocation2 + $0x3e8] sm:$0xf]
    %v350 = vld [vmem:[#allocation2 + $0x3ec] sm:$0xf]
    %v351 = vld [vmem:[#allocation2 + $0x3f0] sm:$0xf]
    %v352 = vld [vmem:[#allocation2 + $0x3f4] sm:$0xf]
    %v353 = vld [vmem:[#allocation2 + $0x3f8] sm:$0xf]
    %v354 = vld [vmem:[#allocation2 + $0x3fc] sm:$0xf]
    %v355 = vld [vmem:[#allocation2 + $0x400] sm:$0xf]
    %v356 = vld [vmem:[#allocation2 + $0x404] sm:$0xf]
    %v357 = vld [vmem:[#allocation2 + $0x408] sm:$0xf]
    %v358 = vld [vmem:[#allocation2 + $0x40c] sm:$0xf]
    %v359 = vld [vmem:[#allocation2 + $0x410] sm:$0xf]
    %v360 = vld [vmem:[#allocation2 + $0x414] sm:$0xf]
    %v361 = vld [vmem:[#allocation2 + $0x418] sm:$0xf]
    %v362 = vld [vmem:[#allocation2 + $0x41c] sm:$0xf]
    %v363 = vld [vmem:[#allocation2 + $0x420] sm:$0xf]
    %v364 = vld [vmem:[#allocation2 + $0x424] sm:$0xf]
    %v365 = vld [vmem:[#allocation2 + $0x428] sm:$0xf]
    %v366 = vld [vmem:[#allocation2 + $0x42c] sm:$0xf]
    %v367 = vld [vmem:[#allocation2 + $0x430] sm:$0xf]
    %v368 = vld [vmem:[#allocation2 + $0x434] sm:$0xf]
    %v369 = vld [vmem:[#allocation2 + $0x438] sm:$0xf]
    %v370 = vld [vmem:[#allocation2 + $0x43c] sm:$0xf]
    %v371 = vld [vmem:[#allocation2 + $0x440] sm:$0xf]
    %v372 = vld [vmem:[#allocation2 + $0x444] sm:$0xf]
    %v373 = vld [vmem:[#allocation2 + $0x448] sm:$0xf]
    %v374 = vld [vmem:[#allocation2 + $0x44c] sm:$0xf]
    %v375 = vld [vmem:[#allocation2 + $0x450] sm:$0xf]
    %v376 = vld [vmem:[#allocation2 + $0x454] sm:$0xf]
    %v377 = vld [vmem:[#allocation2 + $0x458] sm:$0xf]
    %v378 = vld [vmem:[#allocation2 + $0x45c] sm:$0xf]
    %v379 = vld [vmem:[#allocation2 + $0x460] sm:$0xf]
    %v380 = vld [vmem:[#allocation2 + $0x464] sm:$0xf]
    %v381 = vld [vmem:[#allocation2 + $0x468] sm:$0xf]
    %v382 = vld [vmem:[#allocation2 + $0x46c] sm:$0xf]
    %v383 = vld [vmem:[#allocation2 + $0x470] sm:$0xf]
    %v384 = vld [vmem:[#allocation2 + $0x474] sm:$0xf]
    %v385 = vld [vmem:[#allocation2 + $0x478] sm:$0xf]
    %v386 = vld [vmem:[#allocation2 + $0x47c] sm:$0xf]
    %v387 = vld [vmem:[#allocation2 + $0x480] sm:$0xf]
    %v388 = vld [vmem:[#allocation2 + $0x484] sm:$0xf]
    %v389 = vld [vmem:[#allocation2 + $0x488] sm:$0xf]
    %v390 = vld [vmem:[#allocation2 + $0x48c] sm:$0xf]
    %v391 = vld [vmem:[#allocation2 + $0x490] sm:$0xf]
    %v392 = vld [vmem:[#allocation2 + $0x494] sm:$0xf]
    %v393 = vld [vmem:[#allocation2 + $0x498] sm:$0xf]
    %v394 = vld [vmem:[#allocation2 + $0x49c] sm:$0xf]
    %v395 = vld [vmem:[#allocation2 + $0x4a0] sm:$0xf]
    %v396 = vld [vmem:[#allocation2 + $0x4a4] sm:$0xf]
    %v397 = vld [vmem:[#allocation2 + $0x4a8] sm:$0xf]
    %v398 = vld [vmem:[#allocation2 + $0x4ac] sm:$0xf]
    %v399 = vld [vmem:[#allocation2 + $0x4b0] sm:$0xf]
    %v400 = vld [vmem:[#allocation2 + $0x4b4] sm:$0xf]
    %v401 = vld [vmem:[#allocation2 + $0x4b8] sm:$0xf]
    %v402 = vld [vmem:[#allocation2 + $0x4bc] sm:$0xf]
    %v403 = vld [vmem:[#allocation2 + $0x4c0] sm:$0xf]
    %v404 = vld [vmem:[#allocation2 + $0x4c4] sm:$0xf]
    %v405 = vld [vmem:[#allocation2 + $0x4c8] sm:$0xf]
    %v406 = vld [vmem:[#allocation2 + $0x4cc] sm:$0xf]
    %v407 = vld [vmem:[#allocation2 + $0x4d0] sm:$0xf]
    %v408 = vld [vmem:[#allocation2 + $0x4d4] sm:$0xf]
    %v409 = vld [vmem:[#allocation2 + $0x4d8] sm:$0xf]
    %v410 = vld [vmem:[#allocation2 + $0x4dc] sm:$0xf]
    %v411 = vld [vmem:[#allocation2 + $0x4e0] sm:$0xf]
    %v412 = vld [vmem:[#allocation2 + $0x4e4] sm:$0xf]
    %v413 = vld [vmem:[#allocation2 + $0x4e8] sm:$0xf]
    %v414 = vld [vmem:[#allocation2 + $0x4ec] sm:$0xf]
    %v415 = vld [vmem:[#allocation2 + $0x4f0] sm:$0xf]
    %v416 = vld [vmem:[#allocation2 + $0x4f4] sm:$0xf]
    %v417 = vld [vmem:[#allocation2 + $0x4f8] sm:$0xf]
    %v418 = vld [vmem:[#allocation2 + $0x4fc] sm:$0xf]
    %v419 = vld [vmem:[#allocation2 + $0x500] sm:$0xf]
    %v420 = vld [vmem:[#allocation2 + $0x504] sm:$0xf]
    %v421 = vld [vmem:[#allocation2 + $0x508] sm:$0xf]
    %v422 = vld [vmem:[#allocation2 + $0x50c] sm:$0xf]
    %v423 = vld [vmem:[#allocation2 + $0x510] sm:$0xf]
    %v424 = vld [vmem:[#allocation2 + $0x514] sm:$0xf]
    %v425 = vld [vmem:[#allocation2 + $0x518] sm:$0xf]
    %v426 = vld [vmem:[#allocation2 + $0x51c] sm:$0xf]
    %v427 = vld [vmem:[#allocation2 + $0x520] sm:$0xf]
    %v428 = vld [vmem:[#allocation2 + $0x524] sm:$0xf]
    %v429 = vld [vmem:[#allocation2 + $0x528] sm:$0xf]
    %v430 = vld [vmem:[#allocation2 + $0x52c] sm:$0xf]
    %v431 = vld [vmem:[#allocation2 + $0x530] sm:$0xf]
    %v432 = vld [vmem:[#allocation2 + $0x534] sm:$0xf]
    %v433 = vld [vmem:[#allocation2 + $0x538] sm:$0xf]
    %v434 = vld [vmem:[#allocation2 + $0x53c] sm:$0xf]
    %v435 = vld [vmem:[#allocation2 + $0x540] sm:$0xf]
    %v436 = vld [vmem:[#allocation2 + $0x544] sm:$0xf]
    %v437 = vld [vmem:[#allocation2 + $0x548] sm:$0xf]
    %v438 = vld [vmem:[#allocation2 + $0x54c] sm:$0xf]
    %v439 = vld [vmem:[#allocation2 + $0x550] sm:$0xf]
    %v440 = vld [vmem:[#allocation2 + $0x554] sm:$0xf]
    %v441 = vld [vmem:[#allocation2 + $0x558] sm:$0xf]
    %v442 = vld [vmem:[#allocation2 + $0x55c] sm:$0xf]
    %v443 = vld [vmem:[#allocation2 + $0x560] sm:$0xf]
    %v444 = vld [vmem:[#allocation2 + $0x564] sm:$0xf]
    %v445 = vld [vmem:[#allocation2 + $0x568] sm:$0xf]
    %v446 = vld [vmem:[#allocation2 + $0x56c] sm:$0xf]
    %v447 = vld [vmem:[#allocation2 + $0x570] sm:$0xf]
    %v448 = vld [vmem:[#allocation2 + $0x574] sm:$0xf]
    %v449 = vld [vmem:[#allocation2 + $0x578] sm:$0xf]
    %v450 = vld [vmem:[#allocation2 + $0x57c] sm:$0xf]
    %v451 = vld [vmem:[#allocation2 + $0x580] sm:$0xf]
    %v452 = vld [vmem:[#allocation2 + $0x584] sm:$0xf]
    %v453 = vld [vmem:[#allocation2 + $0x588] sm:$0xf]
    %v454 = vld [vmem:[#allocation2 + $0x58c] sm:$0xf]
    %v455 = vld [vmem:[#allocation2 + $0x590] sm:$0xf]
    %v456 = vld [vmem:[#allocation2 + $0x594] sm:$0xf]
    %v457 = vld [vmem:[#allocation2 + $0x598] sm:$0xf]
    %v458 = vld [vmem:[#allocation2 + $0x59c] sm:$0xf]
    %v459 = vld [vmem:[#allocation2 + $0x5a0] sm:$0xf]
    %v460 = vld [vmem:[#allocation2 + $0x5a4] sm:$0xf]
    %v461 = vld [vmem:[#allocation2 + $0x5a8] sm:$0xf]
    %v462 = vld [vmem:[#allocation2 + $0x5ac] sm:$0xf]
    %v463 = vld [vmem:[#allocation2 + $0x5b0] sm:$0xf]
    %v464 = vld [vmem:[#allocation2 + $0x5b4] sm:$0xf]
    %v465 = vld [vmem:[#allocation2 + $0x5b8] sm:$0xf]
    %v466 = vld [vmem:[#allocation2 + $0x5bc] sm:$0xf]
    %v467 = vld [vmem:[#allocation2 + $0x5c0] sm:$0xf]
    %v468 = vld [vmem:[#allocation2 + $0x5c4] sm:$0xf]
    %v469 = vld [vmem:[#allocation2 + $0x5c8] sm:$0xf]
    %v470 = vld [vmem:[#allocation2 + $0x5cc] sm:$0xf]
    %v471 = vld [vmem:[#allocation2 + $0x5d0] sm:$0xf]
    %v472 = vld [vmem:[#allocation2 + $0x5d4] sm:$0xf]
    %v473 = vld [vmem:[#allocation2 + $0x5d8] sm:$0xf]
    %v474 = vld [vmem:[#allocation2 + $0x5dc] sm:$0xf]
    %v475 = vld [vmem:[#allocation2 + $0x5e0] sm:$0xf]
    %v476 = vld [vmem:[#allocation2 + $0x5e4] sm:$0xf]
    %v477 = vld [vmem:[#allocation2 + $0x5e8] sm:$0xf]
    %v478 = vld [vmem:[#allocation2 + $0x5ec] sm:$0xf]
    %v479 = vld [vmem:[#allocation2 + $0x5f0] sm:$0xf]
    %v480 = vld [vmem:[#allocation2 + $0x5f4] sm:$0xf]
    %v481 = vld [vmem:[#allocation2 + $0x5f8] sm:$0xf]
    %v482 = vld [vmem:[#allocation2 + $0x5fc] sm:$0xf]
    %v483 = vld [vmem:[#allocation2 + $0x600] sm:$0xf]
    %v484 = vld [vmem:[#allocation2 + $0x604] sm:$0xf]
    %v485 = vld [vmem:[#allocation2 + $0x608] sm:$0xf]
    %v486 = vld [vmem:[#allocation2 + $0x60c] sm:$0xf]
    %v487 = vld [vmem:[#allocation2 + $0x610] sm:$0xf]
    %v488 = vld [vmem:[#allocation2 + $0x614] sm:$0xf]
    %v489 = vld [vmem:[#allocation2 + $0x618] sm:$0xf]
    %v490 = vld [vmem:[#allocation2 + $0x61c] sm:$0xf]
    %v491 = vld [vmem:[#allocation2 + $0x620] sm:$0xf]
    %v492 = vld [vmem:[#allocation2 + $0x624] sm:$0xf]
    %v493 = vld [vmem:[#allocation2 + $0x628] sm:$0xf]
    %v494 = vld [vmem:[#allocation2 + $0x62c] sm:$0xf]
    %v495 = vld [vmem:[#allocation2 + $0x630] sm:$0xf]
    %v496 = vld [vmem:[#allocation2 + $0x634] sm:$0xf]
    %v497 = vld [vmem:[#allocation2 + $0x638] sm:$0xf]
    %v498 = vld [vmem:[#allocation2 + $0x63c] sm:$0xf]
    %v499 = vld [vmem:[#allocation2 + $0x640] sm:$0xf]
    %v500 = vld [vmem:[#allocation2 + $0x644] sm:$0xf]
    %v501 = vld [vmem:[#allocation2 + $0x648] sm:$0xf]
    %v502 = vld [vmem:[#allocation2 + $0x64c] sm:$0xf]
    %v503 = vld [vmem:[#allocation2 + $0x650] sm:$0xf]
    %v504 = vld [vmem:[#allocation2 + $0x654] sm:$0xf]
    %v505 = vld [vmem:[#allocation2 + $0x658] sm:$0xf]
    %v506 = vld [vmem:[#allocation2 + $0x65c] sm:$0xf]
    %v507 = vld [vmem:[#allocation2 + $0x660] sm:$0xf]
    %v508 = vld [vmem:[#allocation2 + $0x664] sm:$0xf]
    %v509 = vld [vmem:[#allocation2 + $0x668] sm:$0xf]
    %v510 = vld [vmem:[#allocation2 + $0x66c] sm:$0xf]
    %v511 = vld [vmem:[#allocation2 + $0x670] sm:$0xf]
    %v512 = vld [vmem:[#allocation2 + $0x674] sm:$0xf]
    %v513 = vld [vmem:[#allocation2 + $0x678] sm:$0xf]
    %v514 = vld [vmem:[#allocation2 + $0x67c] sm:$0xf]
    %v515 = vld [vmem:[#allocation2 + $0x680] sm:$0xf]
    %v516 = vld [vmem:[#allocation2 + $0x684] sm:$0xf]
    %v517 = vld [vmem:[#allocation2 + $0x688] sm:$0xf]
    %v518 = vld [vmem:[#allocation2 + $0x68c] sm:$0xf]
    %v519 = vld [vmem:[#allocation2 + $0x690] sm:$0xf]
    %v520 = vld [vmem:[#allocation2 + $0x694] sm:$0xf]
    %v521 = vld [vmem:[#allocation2 + $0x698] sm:$0xf]
    %v522 = vld [vmem:[#allocation2 + $0x69c] sm:$0xf]
    %v523 = vld [vmem:[#allocation2 + $0x6a0] sm:$0xf]
    %v524 = vld [vmem:[#allocation2 + $0x6a4] sm:$0xf]
    %v525 = vld [vmem:[#allocation2 + $0x6a8] sm:$0xf]
    %v526 = vld [vmem:[#allocation2 + $0x6ac] sm:$0xf]
    %v527 = vld [vmem:[#allocation2 + $0x6b0] sm:$0xf]
    %v528 = vld [vmem:[#allocation2 + $0x6b4] sm:$0xf]
    %v529 = vld [vmem:[#allocation2 + $0x6b8] sm:$0xf]
    %v530 = vld [vmem:[#allocation2 + $0x6bc] sm:$0xf]
    %v531 = vld [vmem:[#allocation2 + $0x6c0] sm:$0xf]
    %v532 = vld [vmem:[#allocation2 + $0x6c4] sm:$0xf]
    %v533 = vld [vmem:[#allocation2 + $0x6c8] sm:$0xf]
    %v534 = vld [vmem:[#allocation2 + $0x6cc] sm:$0xf]
    %v535 = vld [vmem:[#allocation2 + $0x6d0] sm:$0xf]
    %v536 = vld [vmem:[#allocation2 + $0x6d4] sm:$0xf]
    %v537 = vld [vmem:[#allocation2 + $0x6d8] sm:$0xf]
    %v538 = vld [vmem:[#allocation2 + $0x6dc] sm:$0xf]
    %v539 = vld [vmem:[#allocation2 + $0x6e0] sm:$0xf]
    %v540 = vld [vmem:[#allocation2 + $0x6e4] sm:$0xf]
    %v541 = vld [vmem:[#allocation2 + $0x6e8] sm:$0xf]
    %v542 = vld [vmem:[#allocation2 + $0x6ec] sm:$0xf]
    %v543 = vld [vmem:[#allocation2 + $0x6f0] sm:$0xf]
    %v544 = vld [vmem:[#allocation2 + $0x6f4] sm:$0xf]
    %v545 = vld [vmem:[#allocation2 + $0x6f8] sm:$0xf]
    %v546 = vld [vmem:[#allocation2 + $0x6fc] sm:$0xf]
    %v547 = vld [vmem:[#allocation2 + $0x700] sm:$0xf]
    %v548 = vld [vmem:[#allocation2 + $0x704] sm:$0xf]
    %v549 = vld [vmem:[#allocation2 + $0x708] sm:$0xf]
    %v550 = vld [vmem:[#allocation2 + $0x70c] sm:$0xf]
    %v551 = vld [vmem:[#allocation2 + $0x710] sm:$0xf]
    %v552 = vld [vmem:[#allocation2 + $0x714] sm:$0xf]
    %v553 = vld [vmem:[#allocation2 + $0x718] sm:$0xf]
    %v554 = vld [vmem:[#allocation2 + $0x71c] sm:$0xf]
    %v555 = vld [vmem:[#allocation2 + $0x720] sm:$0xf]
    %v556 = vld [vmem:[#allocation2 + $0x724] sm:$0xf]
    %v557 = vld [vmem:[#allocation2 + $0x728] sm:$0xf]
    %v558 = vld [vmem:[#allocation2 + $0x72c] sm:$0xf]
    %v559 = vld [vmem:[#allocation2 + $0x730] sm:$0xf]
    %v560 = vld [vmem:[#allocation2 + $0x734] sm:$0xf]
    %v561 = vld [vmem:[#allocation2 + $0x738] sm:$0xf]
    %v562 = vld [vmem:[#allocation2 + $0x73c] sm:$0xf]
    %v563 = vld [vmem:[#allocation2 + $0x740] sm:$0xf]
    %v564 = vld [vmem:[#allocation2 + $0x744] sm:$0xf]
    %v565 = vld [vmem:[#allocation2 + $0x748] sm:$0xf]
    %v566 = vld [vmem:[#allocation2 + $0x74c] sm:$0xf]
    %v567 = vld [vmem:[#allocation2 + $0x750] sm:$0xf]
    %v568 = vld [vmem:[#allocation2 + $0x754] sm:$0xf]
    %v569 = vld [vmem:[#allocation2 + $0x758] sm:$0xf]
    %v570 = vld [vmem:[#allocation2 + $0x75c] sm:$0xf]
    %v571 = vld [vmem:[#allocation2 + $0x760] sm:$0xf]
    %v572 = vld [vmem:[#allocation2 + $0x764] sm:$0xf]
    %v573 = vld [vmem:[#allocation2 + $0x768] sm:$0xf]
    %v574 = vld [vmem:[#allocation2 + $0x76c] sm:$0xf]
    %v575 = vld [vmem:[#allocation2 + $0x770] sm:$0xf]
    %v576 = vld [vmem:[#allocation2 + $0x774] sm:$0xf]
    %v577 = vld [vmem:[#allocation2 + $0x778] sm:$0xf]
    %v578 = vld [vmem:[#allocation2 + $0x77c] sm:$0xf]
    %v579 = vld [vmem:[#allocation2 + $0x780] sm:$0xf]
    %v580 = vld [vmem:[#allocation2 + $0x784] sm:$0xf]
    %v581 = vld [vmem:[#allocation2 + $0x788] sm:$0xf]
    %v582 = vld [vmem:[#allocation2 + $0x78c] sm:$0xf]
    %v583 = vld [vmem:[#allocation2 + $0x790] sm:$0xf]
    %v584 = vld [vmem:[#allocation2 + $0x794] sm:$0xf]
    %v585 = vld [vmem:[#allocation2 + $0x798] sm:$0xf]
    %v586 = vld [vmem:[#allocation2 + $0x79c] sm:$0xf]
    %v587 = vld [vmem:[#allocation2 + $0x7a0] sm:$0xf]
    %v588 = vld [vmem:[#allocation2 + $0x7a4] sm:$0xf]
    %v589 = vld [vmem:[#allocation2 + $0x7a8] sm:$0xf]
    %v590 = vld [vmem:[#allocation2 + $0x7ac] sm:$0xf]
    %v591 = vld [vmem:[#allocation2 + $0x7b0] sm:$0xf]
    %v592 = vld [vmem:[#allocation2 + $0x7b4] sm:$0xf]
    %v593 = vld [vmem:[#allocation2 + $0x7b8] sm:$0xf]
    %v594 = vld [vmem:[#allocation2 + $0x7bc] sm:$0xf]
    %v595 = vld [vmem:[#allocation2 + $0x7c0] sm:$0xf]
    %v596 = vld [vmem:[#allocation2 + $0x7c4] sm:$0xf]
    %v597 = vld [vmem:[#allocation2 + $0x7c8] sm:$0xf]
    %v598 = vld [vmem:[#allocation2 + $0x7cc] sm:$0xf]
    %v599 = vld [vmem:[#allocation2 + $0x7d0] sm:$0xf]
    %v600 = vld [vmem:[#allocation2 + $0x7d4] sm:$0xf]
    %v601 = vld [vmem:[#allocation2 + $0x7d8] sm:$0xf]
    %v602 = vld [vmem:[#allocation2 + $0x7dc] sm:$0xf]
    %v603 = vld [vmem:[#allocation2 + $0x7e0] sm:$0xf]
    %v604 = vld [vmem:[#allocation2 + $0x7e4] sm:$0xf]
    %v605 = vld [vmem:[#allocation2 + $0x7e8] sm:$0xf]
    %v606 = vld [vmem:[#allocation2 + $0x7ec] sm:$0xf]
    %v607 = vld [vmem:[#allocation2 + $0x7f0] sm:$0xf]
    %v608 = vld [vmem:[#allocation2 + $0x7f4] sm:$0xf]
    %v609 = vld [vmem:[#allocation2 + $0x7f8] sm:$0xf]
    %v610 = vld [vmem:[#allocation2 + $0x7fc] sm:$0xf]
    %v1123 = vunpack.c.l.b16 %v99
    %v1124 = vunpack.c.l.b16 %v100
    %v1125 = vunpack.c.l.b16 %v101
    %v1126 = vunpack.c.l.b16 %v102
    %v1127 = vunpack.c.l.b16 %v103
    %v1128 = vunpack.c.l.b16 %v104
    %v1129 = vunpack.c.l.b16 %v105
    %v1130 = vunpack.c.l.b16 %v106
    %v1131 = vunpack.c.l.b16 %v107
    %v1132 = vunpack.c.l.b16 %v108
    %v1133 = vunpack.c.l.b16 %v109
    %v1134 = vunpack.c.l.b16 %v110
    %v1135 = vunpack.c.l.b16 %v111
    %v1136 = vunpack.c.l.b16 %v112
    %v1137 = vunpack.c.l.b16 %v113
    %v1138 = vunpack.c.l.b16 %v114
    %v1139 = vunpack.c.l.b16 %v115
    %v1140 = vunpack.c.l.b16 %v116
    %v1141 = vunpack.c.l.b16 %v117
    %v1142 = vunpack.c.l.b16 %v118
    %v1143 = vunpack.c.l.b16 %v119
    %v1144 = vunpack.c.l.b16 %v120
    %v1145 = vunpack.c.l.b16 %v121
    %v1146 = vunpack.c.l.b16 %v122
    %v1147 = vunpack.c.l.b16 %v123
    %v1148 = vunpack.c.l.b16 %v124
    %v1149 = vunpack.c.l.b16 %v125
    %v1150 = vunpack.c.l.b16 %v126
    %v1151 = vunpack.c.l.b16 %v127
    %v1152 = vunpack.c.l.b16 %v128
    %v1153 = vunpack.c.l.b16 %v129
    %v1154 = vunpack.c.l.b16 %v130
    %v1155 = vunpack.c.l.b16 %v131
    %v1156 = vunpack.c.l.b16 %v132
    %v1157 = vunpack.c.l.b16 %v133
    %v1158 = vunpack.c.l.b16 %v134
    %v1159 = vunpack.c.l.b16 %v135
    %v1160 = vunpack.c.l.b16 %v136
    %v1161 = vunpack.c.l.b16 %v137
    %v1162 = vunpack.c.l.b16 %v138
    %v1163 = vunpack.c.l.b16 %v139
    %v1164 = vunpack.c.l.b16 %v140
    %v1165 = vunpack.c.l.b16 %v141
    %v1166 = vunpack.c.l.b16 %v142
    %v1167 = vunpack.c.l.b16 %v143
    %v1168 = vunpack.c.l.b16 %v144
    %v1169 = vunpack.c.l.b16 %v145
    %v1170 = vunpack.c.l.b16 %v146
    %v1171 = vunpack.c.l.b16 %v147
    %v1172 = vunpack.c.l.b16 %v148
    %v1173 = vunpack.c.l.b16 %v149
    %v1174 = vunpack.c.l.b16 %v150
    %v1175 = vunpack.c.l.b16 %v151
    %v1176 = vunpack.c.l.b16 %v152
    %v1177 = vunpack.c.l.b16 %v153
    %v1178 = vunpack.c.l.b16 %v154
    %v1179 = vunpack.c.l.b16 %v155
    %v1180 = vunpack.c.l.b16 %v156
    %v1181 = vunpack.c.l.b16 %v157
    %v1182 = vunpack.c.l.b16 %v158
    %v1183 = vunpack.c.l.b16 %v159
    %v1184 = vunpack.c.l.b16 %v160
    %v1185 = vunpack.c.l.b16 %v161
    %v1186 = vunpack.c.l.b16 %v162
    %v1187 = vunpack.c.l.b16 %v163
    %v1188 = vunpack.c.l.b16 %v164
    %v1189 = vunpack.c.l.b16 %v165
    %v1190 = vunpack.c.l.b16 %v166
    %v1191 = vunpack.c.l.b16 %v167
    %v1192 = vunpack.c.l.b16 %v168
    %v1193 = vunpack.c.l.b16 %v169
    %v1194 = vunpack.c.l.b16 %v170
    %v1195 = vunpack.c.l.b16 %v171
    %v1196 = vunpack.c.l.b16 %v172
    %v1197 = vunpack.c.l.b16 %v173
    %v1198 = vunpack.c.l.b16 %v174
    %v1199 = vunpack.c.l.b16 %v175
    %v1200 = vunpack.c.l.b16 %v176
    %v1201 = vunpack.c.l.b16 %v177
    %v1202 = vunpack.c.l.b16 %v178
    %v1203 = vunpack.c.l.b16 %v179
    %v1204 = vunpack.c.l.b16 %v180
    %v1205 = vunpack.c.l.b16 %v181
    %v1206 = vunpack.c.l.b16 %v182
    %v1207 = vunpack.c.l.b16 %v183
    %v1208 = vunpack.c.l.b16 %v184
    %v1209 = vunpack.c.l.b16 %v185
    %v1210 = vunpack.c.l.b16 %v186
    %v1211 = vunpack.c.l.b16 %v187
    %v1212 = vunpack.c.l.b16 %v188
    %v1213 = vunpack.c.l.b16 %v189
    %v1214 = vunpack.c.l.b16 %v190
    %v1215 = vunpack.c.l.b16 %v191
    %v1216 = vunpack.c.l.b16 %v192
    %v1217 = vunpack.c.l.b16 %v193
    %v1218 = vunpack.c.l.b16 %v194
    %v1219 = vunpack.c.l.b16 %v195
    %v1220 = vunpack.c.l.b16 %v196
    %v1221 = vunpack.c.l.b16 %v197
    %v1222 = vunpack.c.l.b16 %v198
    %v1223 = vunpack.c.l.b16 %v199
    %v1224 = vunpack.c.l.b16 %v200
    %v1225 = vunpack.c.l.b16 %v201
    %v1226 = vunpack.c.l.b16 %v202
    %v1227 = vunpack.c.l.b16 %v203
    %v1228 = vunpack.c.l.b16 %v204
    %v1229 = vunpack.c.l.b16 %v205
    %v1230 = vunpack.c.l.b16 %v206
    %v1231 = vunpack.c.l.b16 %v207
    %v1232 = vunpack.c.l.b16 %v208
    %v1233 = vunpack.c.l.b16 %v209
    %v1234 = vunpack.c.l.b16 %v210
    %v1235 = vunpack.c.l.b16 %v211
    %v1236 = vunpack.c.l.b16 %v212
    %v1237 = vunpack.c.l.b16 %v213
    %v1238 = vunpack.c.l.b16 %v214
    %v1239 = vunpack.c.l.b16 %v215
    %v1240 = vunpack.c.l.b16 %v216
    %v1241 = vunpack.c.l.b16 %v217
    %v1242 = vunpack.c.l.b16 %v218
    %v1243 = vunpack.c.l.b16 %v219
    %v1244 = vunpack.c.l.b16 %v220
    %v1245 = vunpack.c.l.b16 %v221
    %v1246 = vunpack.c.l.b16 %v222
    %v1247 = vunpack.c.l.b16 %v223
    %v1248 = vunpack.c.l.b16 %v224
    %v1249 = vunpack.c.l.b16 %v225
    %v1250 = vunpack.c.l.b16 %v226
    %v1251 = vunpack.c.l.b16 %v227
    %v1252 = vunpack.c.l.b16 %v228
    %v1253 = vunpack.c.l.b16 %v229
    %v1254 = vunpack.c.l.b16 %v230
    %v1255 = vunpack.c.l.b16 %v231
    %v1256 = vunpack.c.l.b16 %v232
    %v1257 = vunpack.c.l.b16 %v233
    %v1258 = vunpack.c.l.b16 %v234
    %v1259 = vunpack.c.l.b16 %v235
    %v1260 = vunpack.c.l.b16 %v236
    %v1261 = vunpack.c.l.b16 %v237
    %v1262 = vunpack.c.l.b16 %v238
    %v1263 = vunpack.c.l.b16 %v239
    %v1264 = vunpack.c.l.b16 %v240
    %v1265 = vunpack.c.l.b16 %v241
    %v1266 = vunpack.c.l.b16 %v242
    %v1267 = vunpack.c.l.b16 %v243
    %v1268 = vunpack.c.l.b16 %v244
    %v1269 = vunpack.c.l.b16 %v245
    %v1270 = vunpack.c.l.b16 %v246
    %v1271 = vunpack.c.l.b16 %v247
    %v1272 = vunpack.c.l.b16 %v248
    %v1273 = vunpack.c.l.b16 %v249
    %v1274 = vunpack.c.l.b16 %v250
    %v1275 = vunpack.c.l.b16 %v251
    %v1276 = vunpack.c.l.b16 %v252
    %v1277 = vunpack.c.l.b16 %v253
    %v1278 = vunpack.c.l.b16 %v254
    %v1279 = vunpack.c.l.b16 %v255
    %v1280 = vunpack.c.l.b16 %v256
    %v1281 = vunpack.c.l.b16 %v257
    %v1282 = vunpack.c.l.b16 %v258
    %v1283 = vunpack.c.l.b16 %v259
    %v1284 = vunpack.c.l.b16 %v260
    %v1285 = vunpack.c.l.b16 %v261
    %v1286 = vunpack.c.l.b16 %v262
    %v1287 = vunpack.c.l.b16 %v263
    %v1288 = vunpack.c.l.b16 %v264
    %v1289 = vunpack.c.l.b16 %v265
    %v1290 = vunpack.c.l.b16 %v266
    %v1291 = vunpack.c.l.b16 %v267
    %v1292 = vunpack.c.l.b16 %v268
    %v1293 = vunpack.c.l.b16 %v269
    %v1294 = vunpack.c.l.b16 %v270
    %v1295 = vunpack.c.l.b16 %v271
    %v1296 = vunpack.c.l.b16 %v272
    %v1297 = vunpack.c.l.b16 %v273
    %v1298 = vunpack.c.l.b16 %v274
    %v1299 = vunpack.c.l.b16 %v275
    %v1300 = vunpack.c.l.b16 %v276
    %v1301 = vunpack.c.l.b16 %v277
    %v1302 = vunpack.c.l.b16 %v278
    %v1303 = vunpack.c.l.b16 %v279
    %v1304 = vunpack.c.l.b16 %v280
    %v1305 = vunpack.c.l.b16 %v281
    %v1306 = vunpack.c.l.b16 %v282
    %v1307 = vunpack.c.l.b16 %v283
    %v1308 = vunpack.c.l.b16 %v284
    %v1309 = vunpack.c.l.b16 %v285
    %v1310 = vunpack.c.l.b16 %v286
    %v1311 = vunpack.c.l.b16 %v287
    %v1312 = vunpack.c.l.b16 %v288
    %v1313 = vunpack.c.l.b16 %v289
    %v1314 = vunpack.c.l.b16 %v290
    %v1315 = vunpack.c.l.b16 %v291
    %v1316 = vunpack.c.l.b16 %v292
    %v1317 = vunpack.c.l.b16 %v293
    %v1318 = vunpack.c.l.b16 %v294
    %v1319 = vunpack.c.l.b16 %v295
    %v1320 = vunpack.c.l.b16 %v296
    %v1321 = vunpack.c.l.b16 %v297
    %v1322 = vunpack.c.l.b16 %v298
    %v1323 = vunpack.c.l.b16 %v299
    %v1324 = vunpack.c.l.b16 %v300
    %v1325 = vunpack.c.l.b16 %v301
    %v1326 = vunpack.c.l.b16 %v302
    %v1327 = vunpack.c.l.b16 %v303
    %v1328 = vunpack.c.l.b16 %v304
    %v1329 = vunpack.c.l.b16 %v305
    %v1330 = vunpack.c.l.b16 %v306
    %v1331 = vunpack.c.l.b16 %v307
    %v1332 = vunpack.c.l.b16 %v308
    %v1333 = vunpack.c.l.b16 %v309
    %v1334 = vunpack.c.l.b16 %v310
    %v1335 = vunpack.c.l.b16 %v311
    %v1336 = vunpack.c.l.b16 %v312
    %v1337 = vunpack.c.l.b16 %v313
    %v1338 = vunpack.c.l.b16 %v314
    %v1339 = vunpack.c.l.b16 %v315
    %v1340 = vunpack.c.l.b16 %v316
    %v1341 = vunpack.c.l.b16 %v317
    %v1342 = vunpack.c.l.b16 %v318
    %v1343 = vunpack.c.l.b16 %v319
    %v1344 = vunpack.c.l.b16 %v320
    %v1345 = vunpack.c.l.b16 %v321
    %v1346 = vunpack.c.l.b16 %v322
    %v1347 = vunpack.c.l.b16 %v323
    %v1348 = vunpack.c.l.b16 %v324
    %v1349 = vunpack.c.l.b16 %v325
    %v1350 = vunpack.c.l.b16 %v326
    %v1351 = vunpack.c.l.b16 %v327
    %v1352 = vunpack.c.l.b16 %v328
    %v1353 = vunpack.c.l.b16 %v329
    %v1354 = vunpack.c.l.b16 %v330
    %v1355 = vunpack.c.l.b16 %v331
    %v1356 = vunpack.c.l.b16 %v332
    %v1357 = vunpack.c.l.b16 %v333
    %v1358 = vunpack.c.l.b16 %v334
    %v1359 = vunpack.c.l.b16 %v335
    %v1360 = vunpack.c.l.b16 %v336
    %v1361 = vunpack.c.l.b16 %v337
    %v1362 = vunpack.c.l.b16 %v338
    %v1363 = vunpack.c.l.b16 %v339
    %v1364 = vunpack.c.l.b16 %v340
    %v1365 = vunpack.c.l.b16 %v341
    %v1366 = vunpack.c.l.b16 %v342
    %v1367 = vunpack.c.l.b16 %v343
    %v1368 = vunpack.c.l.b16 %v344
    %v1369 = vunpack.c.l.b16 %v345
    %v1370 = vunpack.c.l.b16 %v346
    %v1371 = vunpack.c.l.b16 %v347
    %v1372 = vunpack.c.l.b16 %v348
    %v1373 = vunpack.c.l.b16 %v349
    %v1374 = vunpack.c.l.b16 %v350
    %v1375 = vunpack.c.l.b16 %v351
    %v1376 = vunpack.c.l.b16 %v352
    %v1377 = vunpack.c.l.b16 %v353
    %v1378 = vunpack.c.l.b16 %v354
    %v1379 = vunpack.c.l.b16 %v355
    %v1380 = vunpack.c.l.b16 %v356
    %v1381 = vunpack.c.l.b16 %v357
    %v1382 = vunpack.c.l.b16 %v358
    %v1383 = vunpack.c.l.b16 %v359
    %v1384 = vunpack.c.l.b16 %v360
    %v1385 = vunpack.c.l.b16 %v361
    %v1386 = vunpack.c.l.b16 %v362
    %v1387 = vunpack.c.l.b16 %v363
    %v1388 = vunpack.c.l.b16 %v364
    %v1389 = vunpack.c.l.b16 %v365
    %v1390 = vunpack.c.l.b16 %v366
    %v1391 = vunpack.c.l.b16 %v367
    %v1392 = vunpack.c.l.b16 %v368
    %v1393 = vunpack.c.l.b16 %v369
    %v1394 = vunpack.c.l.b16 %v370
    %v1395 = vunpack.c.l.b16 %v371
    %v1396 = vunpack.c.l.b16 %v372
    %v1397 = vunpack.c.l.b16 %v373
    %v1398 = vunpack.c.l.b16 %v374
    %v1399 = vunpack.c.l.b16 %v375
    %v1400 = vunpack.c.l.b16 %v376
    %v1401 = vunpack.c.l.b16 %v377
    %v1402 = vunpack.c.l.b16 %v378
    %v1403 = vunpack.c.l.b16 %v379
    %v1404 = vunpack.c.l.b16 %v380
    %v1405 = vunpack.c.l.b16 %v381
    %v1406 = vunpack.c.l.b16 %v382
    %v1407 = vunpack.c.l.b16 %v383
    %v1408 = vunpack.c.l.b16 %v384
    %v1409 = vunpack.c.l.b16 %v385
    %v1410 = vunpack.c.l.b16 %v386
    %v1411 = vunpack.c.l.b16 %v387
    %v1412 = vunpack.c.l.b16 %v388
    %v1413 = vunpack.c.l.b16 %v389
    %v1414 = vunpack.c.l.b16 %v390
    %v1415 = vunpack.c.l.b16 %v391
    %v1416 = vunpack.c.l.b16 %v392
    %v1417 = vunpack.c.l.b16 %v393
    %v1418 = vunpack.c.l.b16 %v394
    %v1419 = vunpack.c.l.b16 %v395
    %v1420 = vunpack.c.l.b16 %v396
    %v1421 = vunpack.c.l.b16 %v397
    %v1422 = vunpack.c.l.b16 %v398
    %v1423 = vunpack.c.l.b16 %v399
    %v1424 = vunpack.c.l.b16 %v400
    %v1425 = vunpack.c.l.b16 %v401
    %v1426 = vunpack.c.l.b16 %v402
    %v1427 = vunpack.c.l.b16 %v403
    %v1428 = vunpack.c.l.b16 %v404
    %v1429 = vunpack.c.l.b16 %v405
    %v1430 = vunpack.c.l.b16 %v406
    %v1431 = vunpack.c.l.b16 %v407
    %v1432 = vunpack.c.l.b16 %v408
    %v1433 = vunpack.c.l.b16 %v409
    %v1434 = vunpack.c.l.b16 %v410
    %v1435 = vunpack.c.l.b16 %v411
    %v1436 = vunpack.c.l.b16 %v412
    %v1437 = vunpack.c.l.b16 %v413
    %v1438 = vunpack.c.l.b16 %v414
    %v1439 = vunpack.c.l.b16 %v415
    %v1440 = vunpack.c.l.b16 %v416
    %v1441 = vunpack.c.l.b16 %v417
    %v1442 = vunpack.c.l.b16 %v418
    %v1443 = vunpack.c.l.b16 %v419
    %v1444 = vunpack.c.l.b16 %v420
    %v1445 = vunpack.c.l.b16 %v421
    %v1446 = vunpack.c.l.b16 %v422
    %v1447 = vunpack.c.l.b16 %v423
    %v1448 = vunpack.c.l.b16 %v424
    %v1449 = vunpack.c.l.b16 %v425
    %v1450 = vunpack.c.l.b16 %v426
    %v1451 = vunpack.c.l.b16 %v427
    %v1452 = vunpack.c.l.b16 %v428
    %v1453 = vunpack.c.l.b16 %v429
    %v1454 = vunpack.c.l.b16 %v430
    %v1455 = vunpack.c.l.b16 %v431
    %v1456 = vunpack.c.l.b16 %v432
    %v1457 = vunpack.c.l.b16 %v433
    %v1458 = vunpack.c.l.b16 %v434
    %v1459 = vunpack.c.l.b16 %v435
    %v1460 = vunpack.c.l.b16 %v436
    %v1461 = vunpack.c.l.b16 %v437
    %v1462 = vunpack.c.l.b16 %v438
    %v1463 = vunpack.c.l.b16 %v439
    %v1464 = vunpack.c.l.b16 %v440
    %v1465 = vunpack.c.l.b16 %v441
    %v1466 = vunpack.c.l.b16 %v442
    %v1467 = vunpack.c.l.b16 %v443
    %v1468 = vunpack.c.l.b16 %v444
    %v1469 = vunpack.c.l.b16 %v445
    %v1470 = vunpack.c.l.b16 %v446
    %v1471 = vunpack.c.l.b16 %v447
    %v1472 = vunpack.c.l.b16 %v448
    %v1473 = vunpack.c.l.b16 %v449
    %v1474 = vunpack.c.l.b16 %v450
    %v1475 = vunpack.c.l.b16 %v451
    %v1476 = vunpack.c.l.b16 %v452
    %v1477 = vunpack.c.l.b16 %v453
    %v1478 = vunpack.c.l.b16 %v454
    %v1479 = vunpack.c.l.b16 %v455
    %v1480 = vunpack.c.l.b16 %v456
    %v1481 = vunpack.c.l.b16 %v457
    %v1482 = vunpack.c.l.b16 %v458
    %v1483 = vunpack.c.l.b16 %v459
    %v1484 = vunpack.c.l.b16 %v460
    %v1485 = vunpack.c.l.b16 %v461
    %v1486 = vunpack.c.l.b16 %v462
    %v1487 = vunpack.c.l.b16 %v463
    %v1488 = vunpack.c.l.b16 %v464
    %v1489 = vunpack.c.l.b16 %v465
    %v1490 = vunpack.c.l.b16 %v466
    %v1491 = vunpack.c.l.b16 %v467
    %v1492 = vunpack.c.l.b16 %v468
    %v1493 = vunpack.c.l.b16 %v469
    %v1494 = vunpack.c.l.b16 %v470
    %v1495 = vunpack.c.l.b16 %v471
    %v1496 = vunpack.c.l.b16 %v472
    %v1497 = vunpack.c.l.b16 %v473
    %v1498 = vunpack.c.l.b16 %v474
    %v1499 = vunpack.c.l.b16 %v475
    %v1500 = vunpack.c.l.b16 %v476
    %v1501 = vunpack.c.l.b16 %v477
    %v1502 = vunpack.c.l.b16 %v478
    %v1503 = vunpack.c.l.b16 %v479
    %v1504 = vunpack.c.l.b16 %v480
    %v1505 = vunpack.c.l.b16 %v481
    %v1506 = vunpack.c.l.b16 %v482
    %v1507 = vunpack.c.l.b16 %v483
    %v1508 = vunpack.c.l.b16 %v484
    %v1509 = vunpack.c.l.b16 %v485
    %v1510 = vunpack.c.l.b16 %v486
    %v1511 = vunpack.c.l.b16 %v487
    %v1512 = vunpack.c.l.b16 %v488
    %v1513 = vunpack.c.l.b16 %v489
    %v1514 = vunpack.c.l.b16 %v490
    %v1515 = vunpack.c.l.b16 %v491
    %v1516 = vunpack.c.l.b16 %v492
    %v1517 = vunpack.c.l.b16 %v493
    %v1518 = vunpack.c.l.b16 %v494
    %v1519 = vunpack.c.l.b16 %v495
    %v1520 = vunpack.c.l.b16 %v496
    %v1521 = vunpack.c.l.b16 %v497
    %v1522 = vunpack.c.l.b16 %v498
    %v1523 = vunpack.c.l.b16 %v499
    %v1524 = vunpack.c.l.b16 %v500
    %v1525 = vunpack.c.l.b16 %v501
    %v1526 = vunpack.c.l.b16 %v502
    %v1527 = vunpack.c.l.b16 %v503
    %v1528 = vunpack.c.l.b16 %v504
    %v1529 = vunpack.c.l.b16 %v505
    %v1530 = vunpack.c.l.b16 %v506
    %v1531 = vunpack.c.l.b16 %v507
    %v1532 = vunpack.c.l.b16 %v508
    %v1533 = vunpack.c.l.b16 %v509
    %v1534 = vunpack.c.l.b16 %v510
    %v1535 = vunpack.c.l.b16 %v511
    %v1536 = vunpack.c.l.b16 %v512
    %v1537 = vunpack.c.l.b16 %v513
    %v1538 = vunpack.c.l.b16 %v514
    %v1539 = vunpack.c.l.b16 %v515
    %v1540 = vunpack.c.l.b16 %v516
    %v1541 = vunpack.c.l.b16 %v517
    %v1542 = vunpack.c.l.b16 %v518
    %v1543 = vunpack.c.l.b16 %v519
    %v1544 = vunpack.c.l.b16 %v520
    %v1545 = vunpack.c.l.b16 %v521
    %v1546 = vunpack.c.l.b16 %v522
    %v1547 = vunpack.c.l.b16 %v523
    %v1548 = vunpack.c.l.b16 %v524
    %v1549 = vunpack.c.l.b16 %v525
    %v1550 = vunpack.c.l.b16 %v526
    %v1551 = vunpack.c.l.b16 %v527
    %v1552 = vunpack.c.l.b16 %v528
    %v1553 = vunpack.c.l.b16 %v529
    %v1554 = vunpack.c.l.b16 %v530
    %v1555 = vunpack.c.l.b16 %v531
    %v1556 = vunpack.c.l.b16 %v532
    %v1557 = vunpack.c.l.b16 %v533
    %v1558 = vunpack.c.l.b16 %v534
    %v1559 = vunpack.c.l.b16 %v535
    %v1560 = vunpack.c.l.b16 %v536
    %v1561 = vunpack.c.l.b16 %v537
    %v1562 = vunpack.c.l.b16 %v538
    %v1563 = vunpack.c.l.b16 %v539
    %v1564 = vunpack.c.l.b16 %v540
    %v1565 = vunpack.c.l.b16 %v541
    %v1566 = vunpack.c.l.b16 %v542
    %v1567 = vunpack.c.l.b16 %v543
    %v1568 = vunpack.c.l.b16 %v544
    %v1569 = vunpack.c.l.b16 %v545
    %v1570 = vunpack.c.l.b16 %v546
    %v1571 = vunpack.c.l.b16 %v547
    %v1572 = vunpack.c.l.b16 %v548
    %v1573 = vunpack.c.l.b16 %v549
    %v1574 = vunpack.c.l.b16 %v550
    %v1575 = vunpack.c.l.b16 %v551
    %v1576 = vunpack.c.l.b16 %v552
    %v1577 = vunpack.c.l.b16 %v553
    %v1578 = vunpack.c.l.b16 %v554
    %v1579 = vunpack.c.l.b16 %v555
    %v1580 = vunpack.c.l.b16 %v556
    %v1581 = vunpack.c.l.b16 %v557
    %v1582 = vunpack.c.l.b16 %v558
    %v1583 = vunpack.c.l.b16 %v559
    %v1584 = vunpack.c.l.b16 %v560
    %v1585 = vunpack.c.l.b16 %v561
    %v1586 = vunpack.c.l.b16 %v562
    %v1587 = vunpack.c.l.b16 %v563
    %v1588 = vunpack.c.l.b16 %v564
    %v1589 = vunpack.c.l.b16 %v565
    %v1590 = vunpack.c.l.b16 %v566
    %v1591 = vunpack.c.l.b16 %v567
    %v1592 = vunpack.c.l.b16 %v568
    %v1593 = vunpack.c.l.b16 %v569
    %v1594 = vunpack.c.l.b16 %v570
    %v1595 = vunpack.c.l.b16 %v571
    %v1596 = vunpack.c.l.b16 %v572
    %v1597 = vunpack.c.l.b16 %v573
    %v1598 = vunpack.c.l.b16 %v574
    %v1599 = vunpack.c.l.b16 %v575
    %v1600 = vunpack.c.l.b16 %v576
    %v1601 = vunpack.c.l.b16 %v577
    %v1602 = vunpack.c.l.b16 %v578
    %v1603 = vunpack.c.l.b16 %v579
    %v1604 = vunpack.c.l.b16 %v580
    %v1605 = vunpack.c.l.b16 %v581
    %v1606 = vunpack.c.l.b16 %v582
    %v1607 = vunpack.c.l.b16 %v583
    %v1608 = vunpack.c.l.b16 %v584
    %v1609 = vunpack.c.l.b16 %v585
    %v1610 = vunpack.c.l.b16 %v586
    %v1611 = vunpack.c.l.b16 %v587
    %v1612 = vunpack.c.l.b16 %v588
    %v1613 = vunpack.c.l.b16 %v589
    %v1614 = vunpack.c.l.b16 %v590
    %v1615 = vunpack.c.l.b16 %v591
    %v1616 = vunpack.c.l.b16 %v592
    %v1617 = vunpack.c.l.b16 %v593
    %v1618 = vunpack.c.l.b16 %v594
    %v1619 = vunpack.c.l.b16 %v595
    %v1620 = vunpack.c.l.b16 %v596
    %v1621 = vunpack.c.l.b16 %v597
    %v1622 = vunpack.c.l.b16 %v598
    %v1623 = vunpack.c.l.b16 %v599
    %v1624 = vunpack.c.l.b16 %v600
    %v1625 = vunpack.c.l.b16 %v601
    %v1626 = vunpack.c.l.b16 %v602
    %v1627 = vunpack.c.l.b16 %v603
    %v1628 = vunpack.c.l.b16 %v604
    %v1629 = vunpack.c.l.b16 %v605
    %v1630 = vunpack.c.l.b16 %v606
    %v1631 = vunpack.c.l.b16 %v607
    %v1632 = vunpack.c.l.b16 %v608
    %v1633 = vunpack.c.l.b16 %v609
    %v1634 = vunpack.c.l.b16 %v610
    %v1635 = vpack.c.b16 %v1124, %v1123
    %v1636 = vpack.c.b16 %v1126, %v1125
    %v1637 = vpack.c.b16 %v1128, %v1127
    %v1638 = vpack.c.b16 %v1130, %v1129
    %v1639 = vpack.c.b16 %v1132, %v1131
    %v1640 = vpack.c.b16 %v1134, %v1133
    %v1641 = vpack.c.b16 %v1136, %v1135
    %v1642 = vpack.c.b16 %v1138, %v1137
    %v1643 = vpack.c.b16 %v1140, %v1139
    %v1644 = vpack.c.b16 %v1142, %v1141
    %v1645 = vpack.c.b16 %v1144, %v1143
    %v1646 = vpack.c.b16 %v1146, %v1145
    %v1647 = vpack.c.b16 %v1148, %v1147
    %v1648 = vpack.c.b16 %v1150, %v1149
    %v1649 = vpack.c.b16 %v1152, %v1151
    %v1650 = vpack.c.b16 %v1154, %v1153
    %v1651 = vpack.c.b16 %v1156, %v1155
    %v1652 = vpack.c.b16 %v1158, %v1157
    %v1653 = vpack.c.b16 %v1160, %v1159
    %v1654 = vpack.c.b16 %v1162, %v1161
    %v1655 = vpack.c.b16 %v1164, %v1163
    %v1656 = vpack.c.b16 %v1166, %v1165
    %v1657 = vpack.c.b16 %v1168, %v1167
    %v1658 = vpack.c.b16 %v1170, %v1169
    %v1659 = vpack.c.b16 %v1172, %v1171
    %v1660 = vpack.c.b16 %v1174, %v1173
    %v1661 = vpack.c.b16 %v1176, %v1175
    %v1662 = vpack.c.b16 %v1178, %v1177
    %v1663 = vpack.c.b16 %v1180, %v1179
    %v1664 = vpack.c.b16 %v1182, %v1181
    %v1665 = vpack.c.b16 %v1184, %v1183
    %v1666 = vpack.c.b16 %v1186, %v1185
    %v1667 = vpack.c.b16 %v1188, %v1187
    %v1668 = vpack.c.b16 %v1190, %v1189
    %v1669 = vpack.c.b16 %v1192, %v1191
    %v1670 = vpack.c.b16 %v1194, %v1193
    %v1671 = vpack.c.b16 %v1196, %v1195
    %v1672 = vpack.c.b16 %v1198, %v1197
    %v1673 = vpack.c.b16 %v1200, %v1199
    %v1674 = vpack.c.b16 %v1202, %v1201
    %v1675 = vpack.c.b16 %v1204, %v1203
    %v1676 = vpack.c.b16 %v1206, %v1205
    %v1677 = vpack.c.b16 %v1208, %v1207
    %v1678 = vpack.c.b16 %v1210, %v1209
    %v1679 = vpack.c.b16 %v1212, %v1211
    %v1680 = vpack.c.b16 %v1214, %v1213
    %v1681 = vpack.c.b16 %v1216, %v1215
    %v1682 = vpack.c.b16 %v1218, %v1217
    %v1683 = vpack.c.b16 %v1220, %v1219
    %v1684 = vpack.c.b16 %v1222, %v1221
    %v1685 = vpack.c.b16 %v1224, %v1223
    %v1686 = vpack.c.b16 %v1226, %v1225
    %v1687 = vpack.c.b16 %v1228, %v1227
    %v1688 = vpack.c.b16 %v1230, %v1229
    %v1689 = vpack.c.b16 %v1232, %v1231
    %v1690 = vpack.c.b16 %v1234, %v1233
    %v1691 = vpack.c.b16 %v1236, %v1235
    %v1692 = vpack.c.b16 %v1238, %v1237
    %v1693 = vpack.c.b16 %v1240, %v1239
    %v1694 = vpack.c.b16 %v1242, %v1241
    %v1695 = vpack.c.b16 %v1244, %v1243
    %v1696 = vpack.c.b16 %v1246, %v1245
    %v1697 = vpack.c.b16 %v1248, %v1247
    %v1698 = vpack.c.b16 %v1250, %v1249
    %v1699 = vpack.c.b16 %v1252, %v1251
    %v1700 = vpack.c.b16 %v1254, %v1253
    %v1701 = vpack.c.b16 %v1256, %v1255
    %v1702 = vpack.c.b16 %v1258, %v1257
    %v1703 = vpack.c.b16 %v1260, %v1259
    %v1704 = vpack.c.b16 %v1262, %v1261
    %v1705 = vpack.c.b16 %v1264, %v1263
    %v1706 = vpack.c.b16 %v1266, %v1265
    %v1707 = vpack.c.b16 %v1268, %v1267
    %v1708 = vpack.c.b16 %v1270, %v1269
    %v1709 = vpack.c.b16 %v1272, %v1271
    %v1710 = vpack.c.b16 %v1274, %v1273
    %v1711 = vpack.c.b16 %v1276, %v1275
    %v1712 = vpack.c.b16 %v1278, %v1277
    %v1713 = vpack.c.b16 %v1280, %v1279
    %v1714 = vpack.c.b16 %v1282, %v1281
    %v1715 = vpack.c.b16 %v1284, %v1283
    %v1716 = vpack.c.b16 %v1286, %v1285
    %v1717 = vpack.c.b16 %v1288, %v1287
    %v1718 = vpack.c.b16 %v1290, %v1289
    %v1719 = vpack.c.b16 %v1292, %v1291
    %v1720 = vpack.c.b16 %v1294, %v1293
    %v1721 = vpack.c.b16 %v1296, %v1295
    %v1722 = vpack.c.b16 %v1298, %v1297
    %v1723 = vpack.c.b16 %v1300, %v1299
    %v1724 = vpack.c.b16 %v1302, %v1301
    %v1725 = vpack.c.b16 %v1304, %v1303
    %v1726 = vpack.c.b16 %v1306, %v1305
    %v1727 = vpack.c.b16 %v1308, %v1307
    %v1728 = vpack.c.b16 %v1310, %v1309
    %v1729 = vpack.c.b16 %v1312, %v1311
    %v1730 = vpack.c.b16 %v1314, %v1313
    %v1731 = vpack.c.b16 %v1316, %v1315
    %v1732 = vpack.c.b16 %v1318, %v1317
    %v1733 = vpack.c.b16 %v1320, %v1319
    %v1734 = vpack.c.b16 %v1322, %v1321
    %v1735 = vpack.c.b16 %v1324, %v1323
    %v1736 = vpack.c.b16 %v1326, %v1325
    %v1737 = vpack.c.b16 %v1328, %v1327
    %v1738 = vpack.c.b16 %v1330, %v1329
    %v1739 = vpack.c.b16 %v1332, %v1331
    %v1740 = vpack.c.b16 %v1334, %v1333
    %v1741 = vpack.c.b16 %v1336, %v1335
    %v1742 = vpack.c.b16 %v1338, %v1337
    %v1743 = vpack.c.b16 %v1340, %v1339
    %v1744 = vpack.c.b16 %v1342, %v1341
    %v1745 = vpack.c.b16 %v1344, %v1343
    %v1746 = vpack.c.b16 %v1346, %v1345
    %v1747 = vpack.c.b16 %v1348, %v1347
    %v1748 = vpack.c.b16 %v1350, %v1349
    %v1749 = vpack.c.b16 %v1352, %v1351
    %v1750 = vpack.c.b16 %v1354, %v1353
    %v1751 = vpack.c.b16 %v1356, %v1355
    %v1752 = vpack.c.b16 %v1358, %v1357
    %v1753 = vpack.c.b16 %v1360, %v1359
    %v1754 = vpack.c.b16 %v1362, %v1361
    %v1755 = vpack.c.b16 %v1364, %v1363
    %v1756 = vpack.c.b16 %v1366, %v1365
    %v1757 = vpack.c.b16 %v1368, %v1367
    %v1758 = vpack.c.b16 %v1370, %v1369
    %v1759 = vpack.c.b16 %v1372, %v1371
    %v1760 = vpack.c.b16 %v1374, %v1373
    %v1761 = vpack.c.b16 %v1376, %v1375
    %v1762 = vpack.c.b16 %v1378, %v1377
    %v1763 = vpack.c.b16 %v1380, %v1379
    %v1764 = vpack.c.b16 %v1382, %v1381
    %v1765 = vpack.c.b16 %v1384, %v1383
    %v1766 = vpack.c.b16 %v1386, %v1385
    %v1767 = vpack.c.b16 %v1388, %v1387
    %v1768 = vpack.c.b16 %v1390, %v1389
    %v1769 = vpack.c.b16 %v1392, %v1391
    %v1770 = vpack.c.b16 %v1394, %v1393
    %v1771 = vpack.c.b16 %v1396, %v1395
    %v1772 = vpack.c.b16 %v1398, %v1397
    %v1773 = vpack.c.b16 %v1400, %v1399
    %v1774 = vpack.c.b16 %v1402, %v1401
    %v1775 = vpack.c.b16 %v1404, %v1403
    %v1776 = vpack.c.b16 %v1406, %v1405
    %v1777 = vpack.c.b16 %v1408, %v1407
    %v1778 = vpack.c.b16 %v1410, %v1409
    %v1779 = vpack.c.b16 %v1412, %v1411
    %v1780 = vpack.c.b16 %v1414, %v1413
    %v1781 = vpack.c.b16 %v1416, %v1415
    %v1782 = vpack.c.b16 %v1418, %v1417
    %v1783 = vpack.c.b16 %v1420, %v1419
    %v1784 = vpack.c.b16 %v1422, %v1421
    %v1785 = vpack.c.b16 %v1424, %v1423
    %v1786 = vpack.c.b16 %v1426, %v1425
    %v1787 = vpack.c.b16 %v1428, %v1427
    %v1788 = vpack.c.b16 %v1430, %v1429
    %v1789 = vpack.c.b16 %v1432, %v1431
    %v1790 = vpack.c.b16 %v1434, %v1433
    %v1791 = vpack.c.b16 %v1436, %v1435
    %v1792 = vpack.c.b16 %v1438, %v1437
    %v1793 = vpack.c.b16 %v1440, %v1439
    %v1794 = vpack.c.b16 %v1442, %v1441
    %v1795 = vpack.c.b16 %v1444, %v1443
    %v1796 = vpack.c.b16 %v1446, %v1445
    %v1797 = vpack.c.b16 %v1448, %v1447
    %v1798 = vpack.c.b16 %v1450, %v1449
    %v1799 = vpack.c.b16 %v1452, %v1451
    %v1800 = vpack.c.b16 %v1454, %v1453
    %v1801 = vpack.c.b16 %v1456, %v1455
    %v1802 = vpack.c.b16 %v1458, %v1457
    %v1803 = vpack.c.b16 %v1460, %v1459
    %v1804 = vpack.c.b16 %v1462, %v1461
    %v1805 = vpack.c.b16 %v1464, %v1463
    %v1806 = vpack.c.b16 %v1466, %v1465
    %v1807 = vpack.c.b16 %v1468, %v1467
    %v1808 = vpack.c.b16 %v1470, %v1469
    %v1809 = vpack.c.b16 %v1472, %v1471
    %v1810 = vpack.c.b16 %v1474, %v1473
    %v1811 = vpack.c.b16 %v1476, %v1475
    %v1812 = vpack.c.b16 %v1478, %v1477
    %v1813 = vpack.c.b16 %v1480, %v1479
    %v1814 = vpack.c.b16 %v1482, %v1481
    %v1815 = vpack.c.b16 %v1484, %v1483
    %v1816 = vpack.c.b16 %v1486, %v1485
    %v1817 = vpack.c.b16 %v1488, %v1487
    %v1818 = vpack.c.b16 %v1490, %v1489
    %v1819 = vpack.c.b16 %v1492, %v1491
    %v1820 = vpack.c.b16 %v1494, %v1493
    %v1821 = vpack.c.b16 %v1496, %v1495
    %v1822 = vpack.c.b16 %v1498, %v1497
    %v1823 = vpack.c.b16 %v1500, %v1499
    %v1824 = vpack.c.b16 %v1502, %v1501
    %v1825 = vpack.c.b16 %v1504, %v1503
    %v1826 = vpack.c.b16 %v1506, %v1505
    %v1827 = vpack.c.b16 %v1508, %v1507
    %v1828 = vpack.c.b16 %v1510, %v1509
    %v1829 = vpack.c.b16 %v1512, %v1511
    %v1830 = vpack.c.b16 %v1514, %v1513
    %v1831 = vpack.c.b16 %v1516, %v1515
    %v1832 = vpack.c.b16 %v1518, %v1517
    %v1833 = vpack.c.b16 %v1520, %v1519
    %v1834 = vpack.c.b16 %v1522, %v1521
    %v1835 = vpack.c.b16 %v1524, %v1523
    %v1836 = vpack.c.b16 %v1526, %v1525
    %v1837 = vpack.c.b16 %v1528, %v1527
    %v1838 = vpack.c.b16 %v1530, %v1529
    %v1839 = vpack.c.b16 %v1532, %v1531
    %v1840 = vpack.c.b16 %v1534, %v1533
    %v1841 = vpack.c.b16 %v1536, %v1535
    %v1842 = vpack.c.b16 %v1538, %v1537
    %v1843 = vpack.c.b16 %v1540, %v1539
    %v1844 = vpack.c.b16 %v1542, %v1541
    %v1845 = vpack.c.b16 %v1544, %v1543
    %v1846 = vpack.c.b16 %v1546, %v1545
    %v1847 = vpack.c.b16 %v1548, %v1547
    %v1848 = vpack.c.b16 %v1550, %v1549
    %v1849 = vpack.c.b16 %v1552, %v1551
    %v1850 = vpack.c.b16 %v1554, %v1553
    %v1851 = vpack.c.b16 %v1556, %v1555
    %v1852 = vpack.c.b16 %v1558, %v1557
    %v1853 = vpack.c.b16 %v1560, %v1559
    %v1854 = vpack.c.b16 %v1562, %v1561
    %v1855 = vpack.c.b16 %v1564, %v1563
    %v1856 = vpack.c.b16 %v1566, %v1565
    %v1857 = vpack.c.b16 %v1568, %v1567
    %v1858 = vpack.c.b16 %v1570, %v1569
    %v1859 = vpack.c.b16 %v1572, %v1571
    %v1860 = vpack.c.b16 %v1574, %v1573
    %v1861 = vpack.c.b16 %v1576, %v1575
    %v1862 = vpack.c.b16 %v1578, %v1577
    %v1863 = vpack.c.b16 %v1580, %v1579
    %v1864 = vpack.c.b16 %v1582, %v1581
    %v1865 = vpack.c.b16 %v1584, %v1583
    %v1866 = vpack.c.b16 %v1586, %v1585
    %v1867 = vpack.c.b16 %v1588, %v1587
    %v1868 = vpack.c.b16 %v1590, %v1589
    %v1869 = vpack.c.b16 %v1592, %v1591
    %v1870 = vpack.c.b16 %v1594, %v1593
    %v1871 = vpack.c.b16 %v1596, %v1595
    %v1872 = vpack.c.b16 %v1598, %v1597
    %v1873 = vpack.c.b16 %v1600, %v1599
    %v1874 = vpack.c.b16 %v1602, %v1601
    %v1875 = vpack.c.b16 %v1604, %v1603
    %v1876 = vpack.c.b16 %v1606, %v1605
    %v1877 = vpack.c.b16 %v1608, %v1607
    %v1878 = vpack.c.b16 %v1610, %v1609
    %v1879 = vpack.c.b16 %v1612, %v1611
    %v1880 = vpack.c.b16 %v1614, %v1613
    %v1881 = vpack.c.b16 %v1616, %v1615
    %v1882 = vpack.c.b16 %v1618, %v1617
    %v1883 = vpack.c.b16 %v1620, %v1619
    %v1884 = vpack.c.b16 %v1622, %v1621
    %v1885 = vpack.c.b16 %v1624, %v1623
    %v1886 = vpack.c.b16 %v1626, %v1625
    %v1887 = vpack.c.b16 %v1628, %v1627
    %v1888 = vpack.c.b16 %v1630, %v1629
    %v1889 = vpack.c.b16 %v1632, %v1631
    %v1890 = vpack.c.b16 %v1634, %v1633
    %2147 = vmatprep.subr.bf16.mxu0 0
    %2148 = vmatpush1.bf16.msra.mxu0 %v1635
    %2149 = vmatprep.subr.bf16.mxu0 0
    %2150 = vmatpush1.bf16.msra.mxu0 %v1636
    %2151 = vmatprep.subr.bf16.mxu0 0
    %2152 = vmatpush1.bf16.msra.mxu0 %v1637
    %2153 = vmatprep.subr.bf16.mxu0 0
    %2154 = vmatpush1.bf16.msra.mxu0 %v1638
    %2155 = vmatprep.subr.bf16.mxu0 0
    %2156 = vmatpush1.bf16.msra.mxu0 %v1639
    %2157 = vmatprep.subr.bf16.mxu0 0
    %2158 = vmatpush1.bf16.msra.mxu0 %v1640
    %2159 = vmatprep.subr.bf16.mxu0 0
    %2160 = vmatpush1.bf16.msra.mxu0 %v1641
    %2161 = vmatprep.subr.bf16.mxu0 0
    %2162 = vmatpush1.bf16.msra.mxu0 %v1642
    %2163 = vmatprep.subr.bf16.mxu0 0
    %2164 = vmatpush1.bf16.msra.mxu0 %v1643
    %2165 = vmatprep.subr.bf16.mxu0 0
    %2166 = vmatpush1.bf16.msra.mxu0 %v1644
    %2167 = vmatprep.subr.bf16.mxu0 0
    %2168 = vmatpush1.bf16.msra.mxu0 %v1645
    %2169 = vmatprep.subr.bf16.mxu0 0
    %2170 = vmatpush1.bf16.msra.mxu0 %v1646
    %2171 = vmatprep.subr.bf16.mxu0 0
    %2172 = vmatpush1.bf16.msra.mxu0 %v1647
    %2173 = vmatprep.subr.bf16.mxu0 0
    %2174 = vmatpush1.bf16.msra.mxu0 %v1648
    %2175 = vmatprep.subr.bf16.mxu0 0
    %2176 = vmatpush1.bf16.msra.mxu0 %v1649
    %2177 = vmatprep.subr.bf16.mxu0 0
    %2178 = vmatpush1.bf16.msra.mxu0 %v1650
    %2179 = vmatprep.mubr.bf16.mxu0 %v68
    %2180 = vmatmul.mubr.bf16.gmra.mrb[0].mxu0 %v67
    %v2181 = vpop.f32.mrb[0].mxu0
    %v2182 = vadd.f32 0.0, %v2181
    %v2183 = vpop.f32.mrb[0].mxu0
    %v2184 = vpop.f32.mrb[0].mxu0
    %v2185 = vpop.f32.mrb[0].mxu0
    %2186 = vdwg.mxu0
    %2187 = vmatprep.subr.bf16.mxu0 0
    %2188 = vmatpush1.bf16.msra.mxu0 %v1651
    %2189 = vmatprep.subr.bf16.mxu0 0
    %2190 = vmatpush1.bf16.msra.mxu0 %v1652
    %2191 = vmatprep.subr.bf16.mxu0 0
    %2192 = vmatpush1.bf16.msra.mxu0 %v1653
    %2193 = vmatprep.subr.bf16.mxu0 0
    %2194 = vmatpush1.bf16.msra.mxu0 %v1654
    %2195 = vmatprep.subr.bf16.mxu0 0
    %2196 = vmatpush1.bf16.msra.mxu0 %v1655
    %2197 = vmatprep.subr.bf16.mxu0 0
    %2198 = vmatpush1.bf16.msra.mxu0 %v1656
    %2199 = vmatprep.subr.bf16.mxu0 0
    %2200 = vmatpush1.bf16.msra.mxu0 %v1657
    %2201 = vmatprep.subr.bf16.mxu0 0
    %2202 = vmatpush1.bf16.msra.mxu0 %v1658
    %2203 = vmatprep.subr.bf16.mxu0 0
    %2204 = vmatpush1.bf16.msra.mxu0 %v1659
    %2205 = vmatprep.subr.bf16.mxu0 0
    %2206 = vmatpush1.bf16.msra.mxu0 %v1660
    %2207 = vmatprep.subr.bf16.mxu0 0
    %2208 = vmatpush1.bf16.msra.mxu0 %v1661
    %2209 = vmatprep.subr.bf16.mxu0 0
    %2210 = vmatpush1.bf16.msra.mxu0 %v1662
    %2211 = vmatprep.subr.bf16.mxu0 0
    %2212 = vmatpush1.bf16.msra.mxu0 %v1663
    %2213 = vmatprep.subr.bf16.mxu0 0
    %2214 = vmatpush1.bf16.msra.mxu0 %v1664
    %2215 = vmatprep.subr.bf16.mxu0 0
    %2216 = vmatpush1.bf16.msra.mxu0 %v1665
    %2217 = vmatprep.subr.bf16.mxu0 0
    %2218 = vmatpush1.bf16.msra.mxu0 %v1666
    %2219 = vmatprep.mubr.bf16.mxu0 %v70
    %2220 = vmatmul.mubr.bf16.gmra.mrb[0].mxu0 %v69
    %v2221 = vpop.f32.mrb[0].mxu0
    %v2222 = vadd.f32 %v2182, %v2221
    %v2223 = vpop.f32.mrb[0].mxu0
    %v2224 = vpop.f32.mrb[0].mxu0
    %v2225 = vpop.f32.mrb[0].mxu0
    %2226 = vdwg.mxu0
    %2227 = vmatprep.subr.bf16.mxu0 0
    %2228 = vmatpush1.bf16.msra.mxu0 %v1667
    %2229 = vmatprep.subr.bf16.mxu0 0
    %2230 = vmatpush1.bf16.msra.mxu0 %v1668
    %2231 = vmatprep.subr.bf16.mxu0 0
    %2232 = vmatpush1.bf16.msra.mxu0 %v1669
    %2233 = vmatprep.subr.bf16.mxu0 0
    %2234 = vmatpush1.bf16.msra.mxu0 %v1670
    %2235 = vmatprep.subr.bf16.mxu0 0
    %2236 = vmatpush1.bf16.msra.mxu0 %v1671
    %2237 = vmatprep.subr.bf16.mxu0 0
    %2238 = vmatpush1.bf16.msra.mxu0 %v1672
    %2239 = vmatprep.subr.bf16.mxu0 0
    %2240 = vmatpush1.bf16.msra.mxu0 %v1673
    %2241 = vmatprep.subr.bf16.mxu0 0
    %2242 = vmatpush1.bf16.msra.mxu0 %v1674
    %2243 = vmatprep.subr.bf16.mxu0 0
    %2244 = vmatpush1.bf16.msra.mxu0 %v1675
    %2245 = vmatprep.subr.bf16.mxu0 0
    %2246 = vmatpush1.bf16.msra.mxu0 %v1676
    %2247 = vmatprep.subr.bf16.mxu0 0
    %2248 = vmatpush1.bf16.msra.mxu0 %v1677
    %2249 = vmatprep.subr.bf16.mxu0 0
    %2250 = vmatpush1.bf16.msra.mxu0 %v1678
    %2251 = vmatprep.subr.bf16.mxu0 0
    %2252 = vmatpush1.bf16.msra.mxu0 %v1679
    %2253 = vmatprep.subr.bf16.mxu0 0
    %2254 = vmatpush1.bf16.msra.mxu0 %v1680
    %2255 = vmatprep.subr.bf16.mxu0 0
    %2256 = vmatpush1.bf16.msra.mxu0 %v1681
    %2257 = vmatprep.subr.bf16.mxu0 0
    %2258 = vmatpush1.bf16.msra.mxu0 %v1682
    %2259 = vmatprep.mubr.bf16.mxu0 %v72
    %2260 = vmatmul.mubr.bf16.gmra.mrb[0].mxu0 %v71
    %v2261 = vpop.f32.mrb[0].mxu0
    %v2262 = vadd.f32 %v2222, %v2261
    %v2263 = vpop.f32.mrb[0].mxu0
    %v2264 = vpop.f32.mrb[0].mxu0
    %v2265 = vpop.f32.mrb[0].mxu0
    %2266 = vdwg.mxu0
    %2267 = vmatprep.subr.bf16.mxu0 0
    %2268 = vmatpush1.bf16.msra.mxu0 %v1683
    %2269 = vmatprep.subr.bf16.mxu0 0
    %2270 = vmatpush1.bf16.msra.mxu0 %v1684
    %2271 = vmatprep.subr.bf16.mxu0 0
    %2272 = vmatpush1.bf16.msra.mxu0 %v1685
    %2273 = vmatprep.subr.bf16.mxu0 0
    %2274 = vmatpush1.bf16.msra.mxu0 %v1686
    %2275 = vmatprep.subr.bf16.mxu0 0
    %2276 = vmatpush1.bf16.msra.mxu0 %v1687
    %2277 = vmatprep.subr.bf16.mxu0 0
    %2278 = vmatpush1.bf16.msra.mxu0 %v1688
    %2279 = vmatprep.subr.bf16.mxu0 0
    %2280 = vmatpush1.bf16.msra.mxu0 %v1689
    %2281 = vmatprep.subr.bf16.mxu0 0
    %2282 = vmatpush1.bf16.msra.mxu0 %v1690
    %2283 = vmatprep.subr.bf16.mxu0 0
    %2284 = vmatpush1.bf16.msra.mxu0 %v1691
    %2285 = vmatprep.subr.bf16.mxu0 0
    %2286 = vmatpush1.bf16.msra.mxu0 %v1692
    %2287 = vmatprep.subr.bf16.mxu0 0
    %2288 = vmatpush1.bf16.msra.mxu0 %v1693
    %2289 = vmatprep.subr.bf16.mxu0 0
    %2290 = vmatpush1.bf16.msra.mxu0 %v1694
    %2291 = vmatprep.subr.bf16.mxu0 0
    %2292 = vmatpush1.bf16.msra.mxu0 %v1695
    %2293 = vmatprep.subr.bf16.mxu0 0
    %2294 = vmatpush1.bf16.msra.mxu0 %v1696
    %2295 = vmatprep.subr.bf16.mxu0 0
    %2296 = vmatpush1.bf16.msra.mxu0 %v1697
    %2297 = vmatprep.subr.bf16.mxu0 0
    %2298 = vmatpush1.bf16.msra.mxu0 %v1698
    %2299 = vmatprep.mubr.bf16.mxu0 %v74
    %2300 = vmatmul.mubr.bf16.gmra.mrb[0].mxu0 %v73
    %v2301 = vpop.f32.mrb[0].mxu0
    %v2302 = vadd.f32 %v2262, %v2301
    %v2303 = vpop.f32.mrb[0].mxu0
    %v2304 = vpop.f32.mrb[0].mxu0
    %v2305 = vpop.f32.mrb[0].mxu0
    %2306 = vdwg.mxu0
    %2307 = vmatprep.subr.bf16.mxu0 0
    %2308 = vmatpush1.bf16.msra.mxu0 %v1699
    %2309 = vmatprep.subr.bf16.mxu0 0
    %2310 = vmatpush1.bf16.msra.mxu0 %v1700
    %2311 = vmatprep.subr.bf16.mxu0 0
    %2312 = vmatpush1.bf16.msra.mxu0 %v1701
    %2313 = vmatprep.subr.bf16.mxu0 0
    %2314 = vmatpush1.bf16.msra.mxu0 %v1702
    %2315 = vmatprep.subr.bf16.mxu0 0
    %2316 = vmatpush1.bf16.msra.mxu0 %v1703
    %2317 = vmatprep.subr.bf16.mxu0 0
    %2318 = vmatpush1.bf16.msra.mxu0 %v1704
    %2319 = vmatprep.subr.bf16.mxu0 0
    %2320 = vmatpush1.bf16.msra.mxu0 %v1705
    %2321 = vmatprep.subr.bf16.mxu0 0
    %2322 = vmatpush1.bf16.msra.mxu0 %v1706
    %2323 = vmatprep.subr.bf16.mxu0 0
    %2324 = vmatpush1.bf16.msra.mxu0 %v1707
    %2325 = vmatprep.subr.bf16.mxu0 0
    %2326 = vmatpush1.bf16.msra.mxu0 %v1708
    %2327 = vmatprep.subr.bf16.mxu0 0
    %2328 = vmatpush1.bf16.msra.mxu0 %v1709
    %2329 = vmatprep.subr.bf16.mxu0 0
    %2330 = vmatpush1.bf16.msra.mxu0 %v1710
    %2331 = vmatprep.subr.bf16.mxu0 0
    %2332 = vmatpush1.bf16.msra.mxu0 %v1711
    %2333 = vmatprep.subr.bf16.mxu0 0
    %2334 = vmatpush1.bf16.msra.mxu0 %v1712
    %2335 = vmatprep.subr.bf16.mxu0 0
    %2336 = vmatpush1.bf16.msra.mxu0 %v1713
    %2337 = vmatprep.subr.bf16.mxu0 0
    %2338 = vmatpush1.bf16.msra.mxu0 %v1714
    %2339 = vmatprep.mubr.bf16.mxu0 %v76
    %2340 = vmatmul.mubr.bf16.gmra.mrb[0].mxu0 %v75
    %v2341 = vpop.f32.mrb[0].mxu0
    %v2342 = vadd.f32 %v2302, %v2341
    %v2343 = vpop.f32.mrb[0].mxu0
    %v2344 = vpop.f32.mrb[0].mxu0
    %v2345 = vpop.f32.mrb[0].mxu0
    %2346 = vdwg.mxu0
    %2347 = vmatprep.subr.bf16.mxu0 0
    %2348 = vmatpush1.bf16.msra.mxu0 %v1715
    %2349 = vmatprep.subr.bf16.mxu0 0
    %2350 = vmatpush1.bf16.msra.mxu0 %v1716
    %2351 = vmatprep.subr.bf16.mxu0 0
    %2352 = vmatpush1.bf16.msra.mxu0 %v1717
    %2353 = vmatprep.subr.bf16.mxu0 0
    %2354 = vmatpush1.bf16.msra.mxu0 %v1718
    %2355 = vmatprep.subr.bf16.mxu0 0
    %2356 = vmatpush1.bf16.msra.mxu0 %v1719
    %2357 = vmatprep.subr.bf16.mxu0 0
    %2358 = vmatpush1.bf16.msra.mxu0 %v1720
    %2359 = vmatprep.subr.bf16.mxu0 0
    %2360 = vmatpush1.bf16.msra.mxu0 %v1721
    %2361 = vmatprep.subr.bf16.mxu0 0
    %2362 = vmatpush1.bf16.msra.mxu0 %v1722
    %2363 = vmatprep.subr.bf16.mxu0 0
    %2364 = vmatpush1.bf16.msra.mxu0 %v1723
    %2365 = vmatprep.subr.bf16.mxu0 0
    %2366 = vmatpush1.bf16.msra.mxu0 %v1724
    %2367 = vmatprep.subr.bf16.mxu0 0
    %2368 = vmatpush1.bf16.msra.mxu0 %v1725
    %2369 = vmatprep.subr.bf16.mxu0 0
    %2370 = vmatpush1.bf16.msra.mxu0 %v1726
    %2371 = vmatprep.subr.bf16.mxu0 0
    %2372 = vmatpush1.bf16.msra.mxu0 %v1727
    %2373 = vmatprep.subr.bf16.mxu0 0
    %2374 = vmatpush1.bf16.msra.mxu0 %v1728
    %2375 = vmatprep.subr.bf16.mxu0 0
    %2376 = vmatpush1.bf16.msra.mxu0 %v1729
    %2377 = vmatprep.subr.bf16.mxu0 0
    %2378 = vmatpush1.bf16.msra.mxu0 %v1730
    %2379 = vmatprep.mubr.bf16.mxu0 %v78
    %2380 = vmatmul.mubr.bf16.gmra.mrb[0].mxu0 %v77
    %v2381 = vpop.f32.mrb[0].mxu0
    %v2382 = vadd.f32 %v2342, %v2381
    %v2383 = vpop.f32.mrb[0].mxu0
    %v2384 = vpop.f32.mrb[0].mxu0
    %v2385 = vpop.f32.mrb[0].mxu0
    %2386 = vdwg.mxu0
    %2387 = vmatprep.subr.bf16.mxu0 0
    %2388 = vmatpush1.bf16.msra.mxu0 %v1731
    %2389 = vmatprep.subr.bf16.mxu0 0
    %2390 = vmatpush1.bf16.msra.mxu0 %v1732
    %2391 = vmatprep.subr.bf16.mxu0 0
    %2392 = vmatpush1.bf16.msra.mxu0 %v1733
    %2393 = vmatprep.subr.bf16.mxu0 0
    %2394 = vmatpush1.bf16.msra.mxu0 %v1734
    %2395 = vmatprep.subr.bf16.mxu0 0
    %2396 = vmatpush1.bf16.msra.mxu0 %v1735
    %2397 = vmatprep.subr.bf16.mxu0 0
    %2398 = vmatpush1.bf16.msra.mxu0 %v1736
    %2399 = vmatprep.subr.bf16.mxu0 0
    %2400 = vmatpush1.bf16.msra.mxu0 %v1737
    %2401 = vmatprep.subr.bf16.mxu0 0
    %2402 = vmatpush1.bf16.msra.mxu0 %v1738
    %2403 = vmatprep.subr.bf16.mxu0 0
    %2404 = vmatpush1.bf16.msra.mxu0 %v1739
    %2405 = vmatprep.subr.bf16.mxu0 0
    %2406 = vmatpush1.bf16.msra.mxu0 %v1740
    %2407 = vmatprep.subr.bf16.mxu0 0
    %2408 = vmatpush1.bf16.msra.mxu0 %v1741
    %2409 = vmatprep.subr.bf16.mxu0 0
    %2410 = vmatpush1.bf16.msra.mxu0 %v1742
    %2411 = vmatprep.subr.bf16.mxu0 0
    %2412 = vmatpush1.bf16.msra.mxu0 %v1743
    %2413 = vmatprep.subr.bf16.mxu0 0
    %2414 = vmatpush1.bf16.msra.mxu0 %v1744
    %2415 = vmatprep.subr.bf16.mxu0 0
    %2416 = vmatpush1.bf16.msra.mxu0 %v1745
    %2417 = vmatprep.subr.bf16.mxu0 0
    %2418 = vmatpush1.bf16.msra.mxu0 %v1746
    %2419 = vmatprep.mubr.bf16.mxu0 %v80
    %2420 = vmatmul.mubr.bf16.gmra.mrb[0].mxu0 %v79
    %v2421 = vpop.f32.mrb[0].mxu0
    %v2422 = vadd.f32 %v2382, %v2421
    %v2423 = vpop.f32.mrb[0].mxu0
    %v2424 = vpop.f32.mrb[0].mxu0
    %v2425 = vpop.f32.mrb[0].mxu0
    %2426 = vdwg.mxu0
    %2427 = vmatprep.subr.bf16.mxu0 0
    %2428 = vmatpush1.bf16.msra.mxu0 %v1747
    %2429 = vmatprep.subr.bf16.mxu0 0
    %2430 = vmatpush1.bf16.msra.mxu0 %v1748
    %2431 = vmatprep.subr.bf16.mxu0 0
    %2432 = vmatpush1.bf16.msra.mxu0 %v1749
    %2433 = vmatprep.subr.bf16.mxu0 0
    %2434 = vmatpush1.bf16.msra.mxu0 %v1750
    %2435 = vmatprep.subr.bf16.mxu0 0
    %2436 = vmatpush1.bf16.msra.mxu0 %v1751
    %2437 = vmatprep.subr.bf16.mxu0 0
    %2438 = vmatpush1.bf16.msra.mxu0 %v1752
    %2439 = vmatprep.subr.bf16.mxu0 0
    %2440 = vmatpush1.bf16.msra.mxu0 %v1753
    %2441 = vmatprep.subr.bf16.mxu0 0
    %2442 = vmatpush1.bf16.msra.mxu0 %v1754
    %2443 = vmatprep.subr.bf16.mxu0 0
    %2444 = vmatpush1.bf16.msra.mxu0 %v1755
    %2445 = vmatprep.subr.bf16.mxu0 0
    %2446 = vmatpush1.bf16.msra.mxu0 %v1756
    %2447 = vmatprep.subr.bf16.mxu0 0
    %2448 = vmatpush1.bf16.msra.mxu0 %v1757
    %2449 = vmatprep.subr.bf16.mxu0 0
    %2450 = vmatpush1.bf16.msra.mxu0 %v1758
    %2451 = vmatprep.subr.bf16.mxu0 0
    %2452 = vmatpush1.bf16.msra.mxu0 %v1759
    %2453 = vmatprep.subr.bf16.mxu0 0
    %2454 = vmatpush1.bf16.msra.mxu0 %v1760
    %2455 = vmatprep.subr.bf16.mxu0 0
    %2456 = vmatpush1.bf16.msra.mxu0 %v1761
    %2457 = vmatprep.subr.bf16.mxu0 0
    %2458 = vmatpush1.bf16.msra.mxu0 %v1762
    %2459 = vmatprep.mubr.bf16.mxu0 %v82
    %2460 = vmatmul.mubr.bf16.gmra.mrb[0].mxu0 %v81
    %v2461 = vpop.f32.mrb[0].mxu0
    %v2462 = vadd.f32 %v2422, %v2461
    %v2463 = vpop.f32.mrb[0].mxu0
    %v2464 = vpop.f32.mrb[0].mxu0
    %v2465 = vpop.f32.mrb[0].mxu0
    %2466 = vdwg.mxu0
    %2467 = vmatprep.subr.bf16.mxu0 0
    %2468 = vmatpush1.bf16.msra.mxu0 %v1763
    %2469 = vmatprep.subr.bf16.mxu0 0
    %2470 = vmatpush1.bf16.msra.mxu0 %v1764
    %2471 = vmatprep.subr.bf16.mxu0 0
    %2472 = vmatpush1.bf16.msra.mxu0 %v1765
    %2473 = vmatprep.subr.bf16.mxu0 0
    %2474 = vmatpush1.bf16.msra.mxu0 %v1766
    %2475 = vmatprep.subr.bf16.mxu0 0
    %2476 = vmatpush1.bf16.msra.mxu0 %v1767
    %2477 = vmatprep.subr.bf16.mxu0 0
    %2478 = vmatpush1.bf16.msra.mxu0 %v1768
    %2479 = vmatprep.subr.bf16.mxu0 0
    %2480 = vmatpush1.bf16.msra.mxu0 %v1769
    %2481 = vmatprep.subr.bf16.mxu0 0
    %2482 = vmatpush1.bf16.msra.mxu0 %v1770
    %2483 = vmatprep.subr.bf16.mxu0 0
    %2484 = vmatpush1.bf16.msra.mxu0 %v1771
    %2485 = vmatprep.subr.bf16.mxu0 0
    %2486 = vmatpush1.bf16.msra.mxu0 %v1772
    %2487 = vmatprep.subr.bf16.mxu0 0
    %2488 = vmatpush1.bf16.msra.mxu0 %v1773
    %2489 = vmatprep.subr.bf16.mxu0 0
    %2490 = vmatpush1.bf16.msra.mxu0 %v1774
    %2491 = vmatprep.subr.bf16.mxu0 0
    %2492 = vmatpush1.bf16.msra.mxu0 %v1775
    %2493 = vmatprep.subr.bf16.mxu0 0
    %2494 = vmatpush1.bf16.msra.mxu0 %v1776
    %2495 = vmatprep.subr.bf16.mxu0 0
    %2496 = vmatpush1.bf16.msra.mxu0 %v1777
    %2497 = vmatprep.subr.bf16.mxu0 0
    %2498 = vmatpush1.bf16.msra.mxu0 %v1778
    %2499 = vmatprep.mubr.bf16.mxu0 %v84
    %2500 = vmatmul.mubr.bf16.gmra.mrb[0].mxu0 %v83
    %v2501 = vpop.f32.mrb[0].mxu0
    %v2502 = vadd.f32 %v2462, %v2501
    %v2503 = vpop.f32.mrb[0].mxu0
    %v2504 = vpop.f32.mrb[0].mxu0
    %v2505 = vpop.f32.mrb[0].mxu0
    %2506 = vdwg.mxu0
    %2507 = vmatprep.subr.bf16.mxu0 0
    %2508 = vmatpush1.bf16.msra.mxu0 %v1779
    %2509 = vmatprep.subr.bf16.mxu0 0
    %2510 = vmatpush1.bf16.msra.mxu0 %v1780
    %2511 = vmatprep.subr.bf16.mxu0 0
    %2512 = vmatpush1.bf16.msra.mxu0 %v1781
    %2513 = vmatprep.subr.bf16.mxu0 0
    %2514 = vmatpush1.bf16.msra.mxu0 %v1782
    %2515 = vmatprep.subr.bf16.mxu0 0
    %2516 = vmatpush1.bf16.msra.mxu0 %v1783
    %2517 = vmatprep.subr.bf16.mxu0 0
    %2518 = vmatpush1.bf16.msra.mxu0 %v1784
    %2519 = vmatprep.subr.bf16.mxu0 0
    %2520 = vmatpush1.bf16.msra.mxu0 %v1785
    %2521 = vmatprep.subr.bf16.mxu0 0
    %2522 = vmatpush1.bf16.msra.mxu0 %v1786
    %2523 = vmatprep.subr.bf16.mxu0 0
    %2524 = vmatpush1.bf16.msra.mxu0 %v1787
    %2525 = vmatprep.subr.bf16.mxu0 0
    %2526 = vmatpush1.bf16.msra.mxu0 %v1788
    %2527 = vmatprep.subr.bf16.mxu0 0
    %2528 = vmatpush1.bf16.msra.mxu0 %v1789
    %2529 = vmatprep.subr.bf16.mxu0 0
    %2530 = vmatpush1.bf16.msra.mxu0 %v1790
    %2531 = vmatprep.subr.bf16.mxu0 0
    %2532 = vmatpush1.bf16.msra.mxu0 %v1791
    %2533 = vmatprep.subr.bf16.mxu0 0
    %2534 = vmatpush1.bf16.msra.mxu0 %v1792
    %2535 = vmatprep.subr.bf16.mxu0 0
    %2536 = vmatpush1.bf16.msra.mxu0 %v1793
    %2537 = vmatprep.subr.bf16.mxu0 0
    %2538 = vmatpush1.bf16.msra.mxu0 %v1794
    %2539 = vmatprep.mubr.bf16.mxu0 %v86
    %2540 = vmatmul.mubr.bf16.gmra.mrb[0].mxu0 %v85
    %v2541 = vpop.f32.mrb[0].mxu0
    %v2542 = vadd.f32 %v2502, %v2541
    %v2543 = vpop.f32.mrb[0].mxu0
    %v2544 = vpop.f32.mrb[0].mxu0
    %v2545 = vpop.f32.mrb[0].mxu0
    %2546 = vdwg.mxu0
    %2547 = vmatprep.subr.bf16.mxu0 0
    %2548 = vmatpush1.bf16.msra.mxu0 %v1795
    %2549 = vmatprep.subr.bf16.mxu0 0
    %2550 = vmatpush1.bf16.msra.mxu0 %v1796
    %2551 = vmatprep.subr.bf16.mxu0 0
    %2552 = vmatpush1.bf16.msra.mxu0 %v1797
    %2553 = vmatprep.subr.bf16.mxu0 0
    %2554 = vmatpush1.bf16.msra.mxu0 %v1798
    %2555 = vmatprep.subr.bf16.mxu0 0
    %2556 = vmatpush1.bf16.msra.mxu0 %v1799
    %2557 = vmatprep.subr.bf16.mxu0 0
    %2558 = vmatpush1.bf16.msra.mxu0 %v1800
    %2559 = vmatprep.subr.bf16.mxu0 0
    %2560 = vmatpush1.bf16.msra.mxu0 %v1801
    %2561 = vmatprep.subr.bf16.mxu0 0
    %2562 = vmatpush1.bf16.msra.mxu0 %v1802
    %2563 = vmatprep.subr.bf16.mxu0 0
    %2564 = vmatpush1.bf16.msra.mxu0 %v1803
    %2565 = vmatprep.subr.bf16.mxu0 0
    %2566 = vmatpush1.bf16.msra.mxu0 %v1804
    %2567 = vmatprep.subr.bf16.mxu0 0
    %2568 = vmatpush1.bf16.msra.mxu0 %v1805
    %2569 = vmatprep.subr.bf16.mxu0 0
    %2570 = vmatpush1.bf16.msra.mxu0 %v1806
    %2571 = vmatprep.subr.bf16.mxu0 0
    %2572 = vmatpush1.bf16.msra.mxu0 %v1807
    %2573 = vmatprep.subr.bf16.mxu0 0
    %2574 = vmatpush1.bf16.msra.mxu0 %v1808
    %2575 = vmatprep.subr.bf16.mxu0 0
    %2576 = vmatpush1.bf16.msra.mxu0 %v1809
    %2577 = vmatprep.subr.bf16.mxu0 0
    %2578 = vmatpush1.bf16.msra.mxu0 %v1810
    %2579 = vmatprep.mubr.bf16.mxu0 %v88
    %2580 = vmatmul.mubr.bf16.gmra.mrb[0].mxu0 %v87
    %v2581 = vpop.f32.mrb[0].mxu0
    %v2582 = vadd.f32 %v2542, %v2581
    %v2583 = vpop.f32.mrb[0].mxu0
    %v2584 = vpop.f32.mrb[0].mxu0
    %v2585 = vpop.f32.mrb[0].mxu0
    %2586 = vdwg.mxu0
    %2587 = vmatprep.subr.bf16.mxu0 0
    %2588 = vmatpush1.bf16.msra.mxu0 %v1811
    %2589 = vmatprep.subr.bf16.mxu0 0
    %2590 = vmatpush1.bf16.msra.mxu0 %v1812
    %2591 = vmatprep.subr.bf16.mxu0 0
    %2592 = vmatpush1.bf16.msra.mxu0 %v1813
    %2593 = vmatprep.subr.bf16.mxu0 0
    %2594 = vmatpush1.bf16.msra.mxu0 %v1814
    %2595 = vmatprep.subr.bf16.mxu0 0
    %2596 = vmatpush1.bf16.msra.mxu0 %v1815
    %2597 = vmatprep.subr.bf16.mxu0 0
    %2598 = vmatpush1.bf16.msra.mxu0 %v1816
    %2599 = vmatprep.subr.bf16.mxu0 0
    %2600 = vmatpush1.bf16.msra.mxu0 %v1817
    %2601 = vmatprep.subr.bf16.mxu0 0
    %2602 = vmatpush1.bf16.msra.mxu0 %v1818
    %2603 = vmatprep.subr.bf16.mxu0 0
    %2604 = vmatpush1.bf16.msra.mxu0 %v1819
    %2605 = vmatprep.subr.bf16.mxu0 0
    %2606 = vmatpush1.bf16.msra.mxu0 %v1820
    %2607 = vmatprep.subr.bf16.mxu0 0
    %2608 = vmatpush1.bf16.msra.mxu0 %v1821
    %2609 = vmatprep.subr.bf16.mxu0 0
    %2610 = vmatpush1.bf16.msra.mxu0 %v1822
    %2611 = vmatprep.subr.bf16.mxu0 0
    %2612 = vmatpush1.bf16.msra.mxu0 %v1823
    %2613 = vmatprep.subr.bf16.mxu0 0
    %2614 = vmatpush1.bf16.msra.mxu0 %v1824
    %2615 = vmatprep.subr.bf16.mxu0 0
    %2616 = vmatpush1.bf16.msra.mxu0 %v1825
    %2617 = vmatprep.subr.bf16.mxu0 0
    %2618 = vmatpush1.bf16.msra.mxu0 %v1826
    %2619 = vmatprep.mubr.bf16.mxu0 %v90
    %2620 = vmatmul.mubr.bf16.gmra.mrb[0].mxu0 %v89
    %v2621 = vpop.f32.mrb[0].mxu0
    %v2622 = vadd.f32 %v2582, %v2621
    %v2623 = vpop.f32.mrb[0].mxu0
    %v2624 = vpop.f32.mrb[0].mxu0
    %v2625 = vpop.f32.mrb[0].mxu0
    %2626 = vdwg.mxu0
    %2627 = vmatprep.subr.bf16.mxu0 0
    %2628 = vmatpush1.bf16.msra.mxu0 %v1827
    %2629 = vmatprep.subr.bf16.mxu0 0
    %2630 = vmatpush1.bf16.msra.mxu0 %v1828
    %2631 = vmatprep.subr.bf16.mxu0 0
    %2632 = vmatpush1.bf16.msra.mxu0 %v1829
    %2633 = vmatprep.subr.bf16.mxu0 0
    %2634 = vmatpush1.bf16.msra.mxu0 %v1830
    %2635 = vmatprep.subr.bf16.mxu0 0
    %2636 = vmatpush1.bf16.msra.mxu0 %v1831
    %2637 = vmatprep.subr.bf16.mxu0 0
    %2638 = vmatpush1.bf16.msra.mxu0 %v1832
    %2639 = vmatprep.subr.bf16.mxu0 0
    %2640 = vmatpush1.bf16.msra.mxu0 %v1833
    %2641 = vmatprep.subr.bf16.mxu0 0
    %2642 = vmatpush1.bf16.msra.mxu0 %v1834
    %2643 = vmatprep.subr.bf16.mxu0 0
    %2644 = vmatpush1.bf16.msra.mxu0 %v1835
    %2645 = vmatprep.subr.bf16.mxu0 0
    %2646 = vmatpush1.bf16.msra.mxu0 %v1836
    %2647 = vmatprep.subr.bf16.mxu0 0
    %2648 = vmatpush1.bf16.msra.mxu0 %v1837
    %2649 = vmatprep.subr.bf16.mxu0 0
    %2650 = vmatpush1.bf16.msra.mxu0 %v1838
    %2651 = vmatprep.subr.bf16.mxu0 0
    %2652 = vmatpush1.bf16.msra.mxu0 %v1839
    %2653 = vmatprep.subr.bf16.mxu0 0
    %2654 = vmatpush1.bf16.msra.mxu0 %v1840
    %2655 = vmatprep.subr.bf16.mxu0 0
    %2656 = vmatpush1.bf16.msra.mxu0 %v1841
    %2657 = vmatprep.subr.bf16.mxu0 0
    %2658 = vmatpush1.bf16.msra.mxu0 %v1842
    %2659 = vmatprep.mubr.bf16.mxu0 %v92
    %2660 = vmatmul.mubr.bf16.gmra.mrb[0].mxu0 %v91
    %v2661 = vpop.f32.mrb[0].mxu0
    %v2662 = vadd.f32 %v2622, %v2661
    %v2663 = vpop.f32.mrb[0].mxu0
    %v2664 = vpop.f32.mrb[0].mxu0
    %v2665 = vpop.f32.mrb[0].mxu0
    %2666 = vdwg.mxu0
    %2667 = vmatprep.subr.bf16.mxu0 0
    %2668 = vmatpush1.bf16.msra.mxu0 %v1843
    %2669 = vmatprep.subr.bf16.mxu0 0
    %2670 = vmatpush1.bf16.msra.mxu0 %v1844
    %2671 = vmatprep.subr.bf16.mxu0 0
    %2672 = vmatpush1.bf16.msra.mxu0 %v1845
    %2673 = vmatprep.subr.bf16.mxu0 0
    %2674 = vmatpush1.bf16.msra.mxu0 %v1846
    %2675 = vmatprep.subr.bf16.mxu0 0
    %2676 = vmatpush1.bf16.msra.mxu0 %v1847
    %2677 = vmatprep.subr.bf16.mxu0 0
    %2678 = vmatpush1.bf16.msra.mxu0 %v1848
    %2679 = vmatprep.subr.bf16.mxu0 0
    %2680 = vmatpush1.bf16.msra.mxu0 %v1849
    %2681 = vmatprep.subr.bf16.mxu0 0
    %2682 = vmatpush1.bf16.msra.mxu0 %v1850
    %2683 = vmatprep.subr.bf16.mxu0 0
    %2684 = vmatpush1.bf16.msra.mxu0 %v1851
    %2685 = vmatprep.subr.bf16.mxu0 0
    %2686 = vmatpush1.bf16.msra.mxu0 %v1852
    %2687 = vmatprep.subr.bf16.mxu0 0
    %2688 = vmatpush1.bf16.msra.mxu0 %v1853
    %2689 = vmatprep.subr.bf16.mxu0 0
    %2690 = vmatpush1.bf16.msra.mxu0 %v1854
    %2691 = vmatprep.subr.bf16.mxu0 0
    %2692 = vmatpush1.bf16.msra.mxu0 %v1855
    %2693 = vmatprep.subr.bf16.mxu0 0
    %2694 = vmatpush1.bf16.msra.mxu0 %v1856
    %2695 = vmatprep.subr.bf16.mxu0 0
    %2696 = vmatpush1.bf16.msra.mxu0 %v1857
    %2697 = vmatprep.subr.bf16.mxu0 0
    %2698 = vmatpush1.bf16.msra.mxu0 %v1858
    %2699 = vmatprep.mubr.bf16.mxu0 %v94
    %2700 = vmatmul.mubr.bf16.gmra.mrb[0].mxu0 %v93
    %v2701 = vpop.f32.mrb[0].mxu0
    %v2702 = vadd.f32 %v2662, %v2701
    %v2703 = vpop.f32.mrb[0].mxu0
    %v2704 = vpop.f32.mrb[0].mxu0
    %v2705 = vpop.f32.mrb[0].mxu0
    %2706 = vdwg.mxu0
    %2707 = vmatprep.subr.bf16.mxu0 0
    %2708 = vmatpush1.bf16.msra.mxu0 %v1859
    %2709 = vmatprep.subr.bf16.mxu0 0
    %2710 = vmatpush1.bf16.msra.mxu0 %v1860
    %2711 = vmatprep.subr.bf16.mxu0 0
    %2712 = vmatpush1.bf16.msra.mxu0 %v1861
    %2713 = vmatprep.subr.bf16.mxu0 0
    %2714 = vmatpush1.bf16.msra.mxu0 %v1862
    %2715 = vmatprep.subr.bf16.mxu0 0
    %2716 = vmatpush1.bf16.msra.mxu0 %v1863
    %2717 = vmatprep.subr.bf16.mxu0 0
    %2718 = vmatpush1.bf16.msra.mxu0 %v1864
    %2719 = vmatprep.subr.bf16.mxu0 0
    %2720 = vmatpush1.bf16.msra.mxu0 %v1865
    %2721 = vmatprep.subr.bf16.mxu0 0
    %2722 = vmatpush1.bf16.msra.mxu0 %v1866
    %2723 = vmatprep.subr.bf16.mxu0 0
    %2724 = vmatpush1.bf16.msra.mxu0 %v1867
    %2725 = vmatprep.subr.bf16.mxu0 0
    %2726 = vmatpush1.bf16.msra.mxu0 %v1868
    %2727 = vmatprep.subr.bf16.mxu0 0
    %2728 = vmatpush1.bf16.msra.mxu0 %v1869
    %2729 = vmatprep.subr.bf16.mxu0 0
    %2730 = vmatpush1.bf16.msra.mxu0 %v1870
    %2731 = vmatprep.subr.bf16.mxu0 0
    %2732 = vmatpush1.bf16.msra.mxu0 %v1871
    %2733 = vmatprep.subr.bf16.mxu0 0
    %2734 = vmatpush1.bf16.msra.mxu0 %v1872
    %2735 = vmatprep.subr.bf16.mxu0 0
    %2736 = vmatpush1.bf16.msra.mxu0 %v1873
    %2737 = vmatprep.subr.bf16.mxu0 0
    %2738 = vmatpush1.bf16.msra.mxu0 %v1874
    %2739 = vmatprep.mubr.bf16.mxu0 %v96
    %2740 = vmatmul.mubr.bf16.gmra.mrb[0].mxu0 %v95
    %v2741 = vpop.f32.mrb[0].mxu0
    %v2742 = vadd.f32 %v2702, %v2741
    %v2743 = vpop.f32.mrb[0].mxu0
    %v2744 = vpop.f32.mrb[0].mxu0
    %v2745 = vpop.f32.mrb[0].mxu0
    %2746 = vdwg.mxu0
    %2747 = vmatprep.subr.bf16.mxu0 0
    %2748 = vmatpush1.bf16.msra.mxu0 %v1875
    %2749 = vmatprep.subr.bf16.mxu0 0
    %2750 = vmatpush1.bf16.msra.mxu0 %v1876
    %2751 = vmatprep.subr.bf16.mxu0 0
    %2752 = vmatpush1.bf16.msra.mxu0 %v1877
    %2753 = vmatprep.subr.bf16.mxu0 0
    %2754 = vmatpush1.bf16.msra.mxu0 %v1878
    %2755 = vmatprep.subr.bf16.mxu0 0
    %2756 = vmatpush1.bf16.msra.mxu0 %v1879
    %2757 = vmatprep.subr.bf16.mxu0 0
    %2758 = vmatpush1.bf16.msra.mxu0 %v1880
    %2759 = vmatprep.subr.bf16.mxu0 0
    %2760 = vmatpush1.bf16.msra.mxu0 %v1881
    %2761 = vmatprep.subr.bf16.mxu0 0
    %2762 = vmatpush1.bf16.msra.mxu0 %v1882
    %2763 = vmatprep.subr.bf16.mxu0 0
    %2764 = vmatpush1.bf16.msra.mxu0 %v1883
    %2765 = vmatprep.subr.bf16.mxu0 0
    %2766 = vmatpush1.bf16.msra.mxu0 %v1884
    %2767 = vmatprep.subr.bf16.mxu0 0
    %2768 = vmatpush1.bf16.msra.mxu0 %v1885
    %2769 = vmatprep.subr.bf16.mxu0 0
    %2770 = vmatpush1.bf16.msra.mxu0 %v1886
    %2771 = vmatprep.subr.bf16.mxu0 0
    %2772 = vmatpush1.bf16.msra.mxu0 %v1887
    %2773 = vmatprep.subr.bf16.mxu0 0
    %2774 = vmatpush1.bf16.msra.mxu0 %v1888
    %2775 = vmatprep.subr.bf16.mxu0 0
    %2776 = vmatpush1.bf16.msra.mxu0 %v1889
    %2777 = vmatprep.subr.bf16.mxu0 0
    %2778 = vmatpush1.bf16.msra.mxu0 %v1890
    %2779 = vmatprep.mubr.bf16.mxu0 %v98
    %2780 = vmatmul.mubr.bf16.gmra.mrb[0].mxu0 %v97
    %v2781 = vpop.f32.mrb[0].mxu0
    %v2782 = vadd.f32 %v2742, %v2781
    %v2783 = vpop.f32.mrb[0].mxu0
    %v2784 = vpop.f32.mrb[0].mxu0
    %v2785 = vpop.f32.mrb[0].mxu0
    %2786 = vdwg.mxu0
    %v2787 = vrot.slane %v2782, 4
    %v2788 = vadd.f32 %v2782, %v2787
    %v2789 = vrot.slane %v2788, 2
    %v2790 = vadd.f32 %v2788, %v2789
    %v2791 = vrot.slane %v2790, 1
    %v2792 = vadd.f32 %v2790, %v2791
    %v2793 = vmul.f32 %v2782, %v2782
    %v2794 = vrot.slane %v2793, 4
    %v2795 = vadd.f32 %v2793, %v2794
    %v2796 = vrot.slane %v2795, 2
    %v2797 = vadd.f32 %v2795, %v2796
    %v2798 = vrot.slane %v2797, 1
    %v2799 = vadd.f32 %v2797, %v2798
    %v2800 = vmul.f32 %v2792, 0.125
    %v2801 = vmul.f32 %v2799, 0.125
    %v2802 = vmul.f32 %v2800, %v2800
    %v2803 = vsub.f32 %v2801, %v2802
    %v2804 = vmax.f32 %v2803, 0.0
    %v2805 = vsub.f32 %v2782, %v2800
    %v2806 = vadd.f32 %v2804, 1e-05
    %v2807 = vrsqrt.pop %v2806
    %v2808 = vmul.f32 %v2805, %v2807
    %v2809 = vld [vmem:[%s2] sm:$0x1]
    %v2811 = vlaneseq
    %v2812 = vshrl.u32 %v2811, 7
    %v2813 = vsub.s32 0, %v2812
    %v2814 = vrot.slane %v2809, %v2813
    %v2816 = vmul.f32 %v2808, %v2814
    %v2817 = vld [vmem:[%s3] sm:$0x1]
    %v2819 = vlaneseq
    %v2820 = vshrl.u32 %v2819, 7
    %v2821 = vsub.s32 0, %v2820
    %v2822 = vrot.slane %v2817, %v2821
    %v2824 = vadd.f32 %v2816, %v2822
    %v2825 = vmax.f32 %v2824, 0.0
    %v2826 = vld [vmem:[%s4] sm:$0x1]
    %v2828 = vlaneseq
    %v2829 = vshrl.u32 %v2828, 7
    %v2830 = vsub.s32 0, %v2829
    %v2831 = vrot.slane %v2826, %v2830
    %v2833 = vmul.f32 %v2825, %v2831
    %2834 = vadd.xlane.f32.xlu0 %v2833
    %v2835 = vpop.xlane.xlu0 %2834
    %v2836 = vmax.f32 %v2835, 0.0
    %vm2837 = vcmask 7168
    %2838 = vst.msk [vmem:[%s5] sm:$0xff] %vm2837, %v2836
    // Predicated region
    $region26: #{classifier_forward.1} parent=1 // pred_check
      _
    $region27: #{classifier_forward.1} parent=1 // pred_check_branch
      %2840 = sbr.rel (0) target = $region29
    $region28: #{classifier_forward.1} parent=1 // pred_region
      _
    $region29: #{classifier_forward.1} parent=1 // pred_fallthru
      _
    // Predicated region
    $region30: #{classifier_forward.1} parent=1 // pred_check
      _
    $region31: #{classifier_forward.1} parent=1 // pred_check_branch
      %2842 = sbr.rel (0) target = $region33
    $region32: #{classifier_forward.1} parent=1 // pred_region
      _
    $region33: #{classifier_forward.1} parent=1 // pred_fallthru
      _
    %2843 = vsyncpa [#allocation3], 1

</llo_original>
